<compile_context>
chip_gen: v5e
topology: v5e:2x2
jax: 0.10.0
libtpu: 0.0.40
codegen_flags: <defaults>
</compile_context>

<pallas_src>
import jax
import jax.numpy as jnp
from jax.experimental import pallas as pl
from jax.experimental.pallas import tpu as pltpu  # noqa: F401  (no TPU-specific params needed at these sizes)


# ----------------------------------------------------------------------------
# Fused kernel
# ----------------------------------------------------------------------------
def make_fused_kernel(num_layers, T, B, H):
    """Build a kernel closing over the static layer count / seq len / batch / H."""
    H4 = 4 * H

    def kernel(*refs):
        # ref order:
        #   x_text, text_w, text_b,
        #   x_flat (T*B, D), w_ih0 (D,4H), b0 (1,4H),
        #   [w_pack_l (H,8H), b_{l+1} (1,4H)] * (num_layers-1),
        #   w_hh_last (H,4H), mel_w, mel_b,
        #   out_text, out_mel
        (x_text_ref, text_w_ref, text_b_ref,
         x_flat_ref, w_ih0_ref, b0_ref) = refs[:6]
        p = 6
        packs = []
        for _ in range(num_layers - 1):
            packs.append((refs[p], refs[p + 1]))
            p += 2
        w_hh_last_ref = refs[p]
        mel_w_ref, mel_b_ref = refs[p + 1], refs[p + 2]
        out_text_ref, out_mel_ref = refs[p + 3], refs[p + 4]

        f32 = jnp.float32

        # ---- text encoder (independent; hides under LSTM stalls on 1-TC) ----
        out_text_ref[...] = (
            jnp.dot(x_text_ref[...], text_w_ref[...], preferred_element_type=f32)
            + text_b_ref[...]
        ).astype(out_text_ref.dtype)

        # ---- layer-0 input projection, hoisted off the serial chain:
        #      one (T*B, D) @ (D, 4H) MXU call, rows time-major. ----
        g0_all = (jnp.dot(x_flat_ref[...], w_ih0_ref[...],
                          preferred_element_type=f32)
                  + b0_ref[...])                              # (T*B, 4H)

        w_packs = [w_ref[...] for (w_ref, _) in packs]        # (H, 8H) each
        b_next = [b_ref[...] for (_, b_ref) in packs]         # (1, 4H) each
        w_hh_last = w_hh_last_ref[...]                        # (H, 4H)

        zeros_bh = jnp.zeros((B, H), f32)
        zeros_b4h = jnp.zeros((B, H4), f32)
        h = [zeros_bh] * num_layers
        c = [zeros_bh] * num_layers
        hh = [zeros_b4h] * num_layers        # h_l[t-1] @ w_hh_l  (zeros at t=0)
        in_proj = [None] * num_layers        # h_{l-1}[t] @ w_ih_l (layers >= 1)

        def lstm_cell(gates, c_prev):
            # One full-width sigmoid (EUP); g-gate pre-activations were doubled
            # in the weights so tanh(g) = 2*sigmoid(2g) - 1 is a cheap VPU fixup.
            sg = jax.nn.sigmoid(gates)
            i_g = sg[:, 0 * H:1 * H]
            f_g = sg[:, 1 * H:2 * H]
            g_g = 2.0 * sg[:, 2 * H:3 * H] - 1.0
            o_g = sg[:, 3 * H:4 * H]
            c_new = f_g * c_prev + i_g * g_g
            h_new = o_g * jnp.tanh(c_new)    # second (narrow) EUP push
            return h_new, c_new

        # Fully unrolled layer-time wavefront: layer l+1 at time t only depends
        # on h_l[t]; layer l at time t+1 only depends on hh[l] from the same
        # packed dot, so the scheduler can overlap the two chains.
        for t in range(T):
            for l in range(num_layers):
                if l == 0:
                    gates = g0_all[t * B:(t + 1) * B, :] + hh[0]
                else:
                    gates = in_proj[l] + hh[l] + b_next[l - 1]
                h[l], c[l] = lstm_cell(gates, c[l])
                if l < num_layers - 1:
                    # One 256-lane MXU push: [h@w_hh_l | h@w_ih_{l+1}]
                    packed = jnp.dot(h[l], w_packs[l],
                                     preferred_element_type=f32)   # (B, 8H)
                    hh[l] = packed[:, :H4]
                    in_proj[l + 1] = packed[:, H4:]
                elif t + 1 < T:
                    hh[l] = jnp.dot(h[l], w_hh_last,
                                    preferred_element_type=f32)

        # ---- mel Linear on hidden[-1] of the last layer ----
        out_mel_ref[...] = (
            jnp.dot(h[num_layers - 1], mel_w_ref[...], preferred_element_type=f32)
            + mel_b_ref[...]
        ).astype(out_mel_ref.dtype)

    return kernel


# ----------------------------------------------------------------------------
# Wrapper: weight packing / scaling is layout plumbing done once in JAX.
# ----------------------------------------------------------------------------
def simple_devise_forward(params, x_text, x_spkr):
    """Fused forward: (out_text, out_mel) = SimpleDeviseModel(x_text, x_spkr)."""
    B, T, D = x_spkr.shape
    E = params["text_w"].shape[1]
    layers = params["layers"]
    L = len(layers)
    H = layers[0]["w_hh"].shape[0]
    H4 = 4 * H
    assert H4 % 128 == 0, "kernel assumes 4*hidden is a multiple of 128 lanes"

    # Double the g-gate columns so one sigmoid covers all four gates in-kernel.
    gscale = jnp.ones((H4,), jnp.float32).at[2 * H:3 * H].set(2.0)

    # Time-major (T*B, D) slab: rows [t*B:(t+1)*B] = time step t.
    x_flat = jnp.transpose(x_spkr, (1, 0, 2)).reshape(T * B, D)

    args = [
        x_text, params["text_w"], params["text_b"].reshape(1, E),
        x_flat,
        layers[0]["w_ih"] * gscale,
        (layers[0]["b"] * gscale).reshape(1, H4),
    ]
    for l in range(L - 1):
        w_pack = jnp.concatenate(
            [layers[l]["w_hh"] * gscale, layers[l + 1]["w_ih"] * gscale],
            axis=1)                                            # (H, 8H)
        args += [w_pack, (layers[l + 1]["b"] * gscale).reshape(1, H4)]
    args += [layers[L - 1]["w_hh"] * gscale,
             params["mel_w"], params["mel_b"].reshape(1, E)]

    out_text, out_mel = pl.pallas_call(
        make_fused_kernel(L, T, B, H),
        out_shape=(jax.ShapeDtypeStruct((B, E), x_text.dtype),
                   jax.ShapeDtypeStruct((B, E), x_text.dtype)),
    )(*args)
    return out_text, out_mel


# ----------------------------------------------------------------------------
# Parameter init
# ----------------------------------------------------------------------------
def init_params(key, *, audio_dim, hidden, embed, num_layers, text_dim=768):
    keys = jax.random.split(key, 4 + 3 * num_layers)
    k = iter(keys)
    params = {
        # text_enc: Linear(text_dim -> embed)
        "text_w": 0.05 * jax.random.normal(next(k), (text_dim, embed), jnp.float32),
        "text_b": 0.05 * jax.random.normal(next(k), (embed,), jnp.float32),
        # mel_enc.linear: Linear(hidden -> embed)
        "mel_w": 0.05 * jax.random.normal(next(k), (hidden, embed), jnp.float32),
        "mel_b": 0.05 * jax.random.normal(next(k), (embed,), jnp.float32),
        "layers": [],
    }
    for l in range(num_layers):
        d_in = audio_dim if l == 0 else hidden
        params["layers"].append({
            "w_ih": 0.1 * jax.random.normal(next(k), (d_in, 4 * hidden), jnp.float32),
            "w_hh": 0.1 * jax.random.normal(next(k), (hidden, 4 * hidden), jnp.float32),
            # combined b_ih + b_hh
            "b": 0.1 * jax.random.normal(next(k), (4 * hidden,), jnp.float32),
        })
    return params


# ----------------------------------------------------------------------------
# Pure-JAX reference (for verification)
# ----------------------------------------------------------------------------
def reference_forward(params, x_text, x_spkr):
    out_text = x_text @ params["text_w"] + params["text_b"]

    B, T, _ = x_spkr.shape
    H = params["layers"][0]["w_hh"].shape[0]
    seq = x_spkr
    for layer in params["layers"]:
        h = jnp.zeros((B, H), jnp.float32)
        c = jnp.zeros((B, H), jnp.float32)
        outs = []
        for t in range(T):
            g = seq[:, t, :] @ layer["w_ih"] + h @ layer["w_hh"] + layer["b"]
            i_g = jax.nn.sigmoid(g[:, 0 * H:1 * H])
            f_g = jax.nn.sigmoid(g[:, 1 * H:2 * H])
            g_g = jnp.tanh(g[:, 2 * H:3 * H])
            o_g = jax.nn.sigmoid(g[:, 3 * H:4 * H])
            c = f_g * c + i_g * g_g
            h = o_g * jnp.tanh(c)
            outs.append(h)
        seq = jnp.stack(outs, axis=1)
    out_mel = seq[:, -1, :] @ params["mel_w"] + params["mel_b"]
    return out_text, out_mel


# ----------------------------------------------------------------------------
if __name__ == "__main__":
    B, T = 2, 8
    audio_dim, hidden, embed, num_layers, text_dim = 16, 32, 32, 2, 768

    key = jax.random.PRNGKey(0)
    k_param, k_text, k_spkr = jax.random.split(key, 3)

    params = init_params(k_param, audio_dim=audio_dim, hidden=hidden,
                         embed=embed, num_layers=num_layers, text_dim=text_dim)
    x_text = jax.random.normal(k_text, (B, text_dim), jnp.float32)
    x_spkr = jax.random.normal(k_spkr, (B, T, audio_dim), jnp.float32)

    out_text, out_mel = simple_devise_forward(params, x_text, x_spkr)
    jax.block_until_ready((out_text, out_mel))

    ref_text, ref_mel = reference_forward(params, x_text, x_spkr)
    assert out_text.shape == (B, embed) and out_mel.shape == (B, embed)
    assert jnp.allclose(out_text, ref_text, atol=1e-4, rtol=1e-4)
    assert jnp.allclose(out_mel, ref_mel, atol=1e-4, rtol=1e-4)

    print("KERNEL_OK")
</pallas_src>

<mosaic_0001>
module attributes {stable_mosaic.version = 11 : i64} {
  func.func @kernel(%arg0: memref<2x768xf32, #tpu.memory_space<vmem>>, %arg1: memref<768x32xf32, #tpu.memory_space<vmem>>, %arg2: memref<1x32xf32, #tpu.memory_space<vmem>>, %arg3: memref<16x16xf32, #tpu.memory_space<vmem>>, %arg4: memref<16x128xf32, #tpu.memory_space<vmem>>, %arg5: memref<1x128xf32, #tpu.memory_space<vmem>>, %arg6: memref<32x256xf32, #tpu.memory_space<vmem>>, %arg7: memref<1x128xf32, #tpu.memory_space<vmem>>, %arg8: memref<32x128xf32, #tpu.memory_space<vmem>>, %arg9: memref<32x32xf32, #tpu.memory_space<vmem>>, %arg10: memref<1x32xf32, #tpu.memory_space<vmem>>, %arg11: memref<2x32xf32, #tpu.memory_space<vmem>>, %arg12: memref<2x32xf32, #tpu.memory_space<vmem>>) attributes {dimension_semantics = [], scalar_prefetch = 0 : i64, scratch_operands = 0 : i64, tpu.core_type = #tpu.core_type<tc>} {
    %c0 = arith.constant 0 : index
    %c0_0 = arith.constant 0 : index
    %0 = vector.load %arg0[%c0, %c0_0] : memref<2x768xf32, #tpu.memory_space<vmem>>, vector<2x768xf32>
    %c0_1 = arith.constant 0 : index
    %c0_2 = arith.constant 0 : index
    %1 = vector.load %arg1[%c0_1, %c0_2] : memref<768x32xf32, #tpu.memory_space<vmem>>, vector<768x32xf32>
    %cst = arith.constant dense<0.000000e+00> : vector<2x32xf32>
    %2 = tpu.matmul %0, %1, %cst {dimension_numbers = #tpu.dot_dimension_numbers<[1], [0], [0], [1], [0, 0, 1, 1], [], []>} : vector<2x768xf32>, vector<768x32xf32>, vector<2x32xf32> -> vector<2x32xf32>
    %c0_3 = arith.constant 0 : index
    %c0_4 = arith.constant 0 : index
    %3 = vector.load %arg2[%c0_3, %c0_4] : memref<1x32xf32, #tpu.memory_space<vmem>>, vector<1x32xf32>
    %4 = vector.broadcast %3 : vector<1x32xf32> to vector<2x32xf32>
    %5 = arith.addf %2, %4 : vector<2x32xf32>
    %c0_5 = arith.constant 0 : index
    %c0_6 = arith.constant 0 : index
    %6 = vector.load %arg11[%c0_5, %c0_6] : memref<2x32xf32, #tpu.memory_space<vmem>>, vector<2x32xf32>
    tpu.vector_store %arg11[%c0_5, %c0_6], %5 {strides = array<i32>} : memref<2x32xf32, #tpu.memory_space<vmem>>, vector<2x32xf32>,
    %c0_7 = arith.constant 0 : index
    %c0_8 = arith.constant 0 : index
    %7 = vector.load %arg3[%c0_7, %c0_8] : memref<16x16xf32, #tpu.memory_space<vmem>>, vector<16x16xf32>
    %c0_9 = arith.constant 0 : index
    %c0_10 = arith.constant 0 : index
    %8 = vector.load %arg4[%c0_9, %c0_10] : memref<16x128xf32, #tpu.memory_space<vmem>>, vector<16x128xf32>
    %cst_11 = arith.constant dense<0.000000e+00> : vector<16x128xf32>
    %9 = tpu.matmul %7, %8, %cst_11 {dimension_numbers = #tpu.dot_dimension_numbers<[1], [0], [0], [1], [0, 0, 1, 1], [], []>} : vector<16x16xf32>, vector<16x128xf32>, vector<16x128xf32> -> vector<16x128xf32>
    %c0_12 = arith.constant 0 : index
    %c0_13 = arith.constant 0 : index
    %10 = vector.load %arg5[%c0_12, %c0_13] : memref<1x128xf32, #tpu.memory_space<vmem>>, vector<1x128xf32>
    %11 = vector.broadcast %10 : vector<1x128xf32> to vector<16x128xf32>
    %12 = arith.addf %9, %11 : vector<16x128xf32>
    %c0_14 = arith.constant 0 : index
    %c0_15 = arith.constant 0 : index
    %13 = vector.load %arg6[%c0_14, %c0_15] : memref<32x256xf32, #tpu.memory_space<vmem>>, vector<32x256xf32>
    %c0_16 = arith.constant 0 : index
    %c0_17 = arith.constant 0 : index
    %14 = vector.load %arg7[%c0_16, %c0_17] : memref<1x128xf32, #tpu.memory_space<vmem>>, vector<1x128xf32>
    %c0_18 = arith.constant 0 : index
    %c0_19 = arith.constant 0 : index
    %15 = vector.load %arg8[%c0_18, %c0_19] : memref<32x128xf32, #tpu.memory_space<vmem>>, vector<32x128xf32>
    %cst_20 = arith.constant 0.000000e+00 : f32
    %16 = vector.broadcast %cst_20 : f32 to vector<2x32xf32>
    %cst_21 = arith.constant 0.000000e+00 : f32
    %17 = vector.broadcast %cst_21 : f32 to vector<2x128xf32>
    %18 = vector.extract_strided_slice %12 {offsets = [0, 0], sizes = [2, 128], strides = [1, 1]} : vector<16x128xf32> to vector<2x128xf32>
    %19 = arith.addf %18, %17 : vector<2x128xf32>
    %20 = arith.negf %19 : vector<2x128xf32>
    %21 = math.exp %20 : vector<2x128xf32>
    %cst_22 = arith.constant 1.000000e+00 : f32
    %22 = vector.broadcast %cst_22 : f32 to vector<2x128xf32>
    %23 = arith.addf %22, %21 : vector<2x128xf32>
    %24 = arith.divf %22, %23 : vector<2x128xf32>
    %25 = vector.extract_strided_slice %24 {offsets = [0, 0], sizes = [2, 32], strides = [1, 1]} : vector<2x128xf32> to vector<2x32xf32>
    %26 = vector.extract_strided_slice %24 {offsets = [0, 32], sizes = [2, 32], strides = [1, 1]} : vector<2x128xf32> to vector<2x32xf32>
    %27 = vector.extract_strided_slice %24 {offsets = [0, 64], sizes = [2, 32], strides = [1, 1]} : vector<2x128xf32> to vector<2x32xf32>
    %cst_23 = arith.constant 2.000000e+00 : f32
    %28 = vector.broadcast %cst_23 : f32 to vector<2x32xf32>
    %29 = arith.mulf %28, %27 : vector<2x32xf32>
    %cst_24 = arith.constant 1.000000e+00 : f32
    %30 = vector.broadcast %cst_24 : f32 to vector<2x32xf32>
    %31 = arith.subf %29, %30 : vector<2x32xf32>
    %32 = vector.extract_strided_slice %24 {offsets = [0, 96], sizes = [2, 32], strides = [1, 1]} : vector<2x128xf32> to vector<2x32xf32>
    %33 = arith.mulf %26, %16 : vector<2x32xf32>
    %34 = arith.mulf %25, %31 : vector<2x32xf32>
    %35 = arith.addf %33, %34 : vector<2x32xf32>
    %36 = math.tanh %35 : vector<2x32xf32>
    %37 = arith.mulf %32, %36 : vector<2x32xf32>
    %cst_25 = arith.constant dense<0.000000e+00> : vector<2x256xf32>
    %38 = tpu.matmul %37, %13, %cst_25 {dimension_numbers = #tpu.dot_dimension_numbers<[1], [0], [0], [1], [0, 0, 1, 1], [], []>} : vector<2x32xf32>, vector<32x256xf32>, vector<2x256xf32> -> vector<2x256xf32>
    %39 = vector.extract_strided_slice %38 {offsets = [0, 0], sizes = [2, 128], strides = [1, 1]} : vector<2x256xf32> to vector<2x128xf32>
    %40 = vector.extract_strided_slice %38 {offsets = [0, 128], sizes = [2, 128], strides = [1, 1]} : vector<2x256xf32> to vector<2x128xf32>
    %41 = arith.addf %40, %17 : vector<2x128xf32>
    %42 = vector.broadcast %14 : vector<1x128xf32> to vector<2x128xf32>
    %43 = arith.addf %41, %42 : vector<2x128xf32>
    %44 = arith.negf %43 : vector<2x128xf32>
    %45 = math.exp %44 : vector<2x128xf32>
    %cst_26 = arith.constant 1.000000e+00 : f32
    %46 = vector.broadcast %cst_26 : f32 to vector<2x128xf32>
    %47 = arith.addf %46, %45 : vector<2x128xf32>
    %48 = arith.divf %46, %47 : vector<2x128xf32>
    %49 = vector.extract_strided_slice %48 {offsets = [0, 0], sizes = [2, 32], strides = [1, 1]} : vector<2x128xf32> to vector<2x32xf32>
    %50 = vector.extract_strided_slice %48 {offsets = [0, 32], sizes = [2, 32], strides = [1, 1]} : vector<2x128xf32> to vector<2x32xf32>
    %51 = vector.extract_strided_slice %48 {offsets = [0, 64], sizes = [2, 32], strides = [1, 1]} : vector<2x128xf32> to vector<2x32xf32>
    %cst_27 = arith.constant 2.000000e+00 : f32
    %52 = vector.broadcast %cst_27 : f32 to vector<2x32xf32>
    %53 = arith.mulf %52, %51 : vector<2x32xf32>
    %cst_28 = arith.constant 1.000000e+00 : f32
    %54 = vector.broadcast %cst_28 : f32 to vector<2x32xf32>
    %55 = arith.subf %53, %54 : vector<2x32xf32>
    %56 = vector.extract_strided_slice %48 {offsets = [0, 96], sizes = [2, 32], strides = [1, 1]} : vector<2x128xf32> to vector<2x32xf32>
    %57 = arith.mulf %50, %16 : vector<2x32xf32>
    %58 = arith.mulf %49, %55 : vector<2x32xf32>
    %59 = arith.addf %57, %58 : vector<2x32xf32>
    %60 = math.tanh %59 : vector<2x32xf32>
    %61 = arith.mulf %56, %60 : vector<2x32xf32>
    %cst_29 = arith.constant dense<0.000000e+00> : vector<2x128xf32>
    %62 = tpu.matmul %61, %15, %cst_29 {dimension_numbers = #tpu.dot_dimension_numbers<[1], [0], [0], [1], [0, 0, 1, 1], [], []>} : vector<2x32xf32>, vector<32x128xf32>, vector<2x128xf32> -> vector<2x128xf32>
    %63 = vector.extract_strided_slice %12 {offsets = [2, 0], sizes = [2, 128], strides = [1, 1]} : vector<16x128xf32> to vector<2x128xf32>
    %64 = arith.addf %63, %39 : vector<2x128xf32>
    %65 = arith.negf %64 : vector<2x128xf32>
    %66 = math.exp %65 : vector<2x128xf32>
    %cst_30 = arith.constant 1.000000e+00 : f32
    %67 = vector.broadcast %cst_30 : f32 to vector<2x128xf32>
    %68 = arith.addf %67, %66 : vector<2x128xf32>
    %69 = arith.divf %67, %68 : vector<2x128xf32>
    %70 = vector.extract_strided_slice %69 {offsets = [0, 0], sizes = [2, 32], strides = [1, 1]} : vector<2x128xf32> to vector<2x32xf32>
    %71 = vector.extract_strided_slice %69 {offsets = [0, 32], sizes = [2, 32], strides = [1, 1]} : vector<2x128xf32> to vector<2x32xf32>
    %72 = vector.extract_strided_slice %69 {offsets = [0, 64], sizes = [2, 32], strides = [1, 1]} : vector<2x128xf32> to vector<2x32xf32>
    %cst_31 = arith.constant 2.000000e+00 : f32
    %73 = vector.broadcast %cst_31 : f32 to vector<2x32xf32>
    %74 = arith.mulf %73, %72 : vector<2x32xf32>
    %cst_32 = arith.constant 1.000000e+00 : f32
    %75 = vector.broadcast %cst_32 : f32 to vector<2x32xf32>
    %76 = arith.subf %74, %75 : vector<2x32xf32>
    %77 = vector.extract_strided_slice %69 {offsets = [0, 96], sizes = [2, 32], strides = [1, 1]} : vector<2x128xf32> to vector<2x32xf32>
    %78 = arith.mulf %71, %35 : vector<2x32xf32>
    %79 = arith.mulf %70, %76 : vector<2x32xf32>
    %80 = arith.addf %78, %79 : vector<2x32xf32>
    %81 = math.tanh %80 : vector<2x32xf32>
    %82 = arith.mulf %77, %81 : vector<2x32xf32>
    %cst_33 = arith.constant dense<0.000000e+00> : vector<2x256xf32>
    %83 = tpu.matmul %82, %13, %cst_33 {dimension_numbers = #tpu.dot_dimension_numbers<[1], [0], [0], [1], [0, 0, 1, 1], [], []>} : vector<2x32xf32>, vector<32x256xf32>, vector<2x256xf32> -> vector<2x256xf32>
    %84 = vector.extract_strided_slice %83 {offsets = [0, 0], sizes = [2, 128], strides = [1, 1]} : vector<2x256xf32> to vector<2x128xf32>
    %85 = vector.extract_strided_slice %83 {offsets = [0, 128], sizes = [2, 128], strides = [1, 1]} : vector<2x256xf32> to vector<2x128xf32>
    %86 = arith.addf %85, %62 : vector<2x128xf32>
    %87 = vector.broadcast %14 : vector<1x128xf32> to vector<2x128xf32>
    %88 = arith.addf %86, %87 : vector<2x128xf32>
    %89 = arith.negf %88 : vector<2x128xf32>
    %90 = math.exp %89 : vector<2x128xf32>
    %cst_34 = arith.constant 1.000000e+00 : f32
    %91 = vector.broadcast %cst_34 : f32 to vector<2x128xf32>
    %92 = arith.addf %91, %90 : vector<2x128xf32>
    %93 = arith.divf %91, %92 : vector<2x128xf32>
    %94 = vector.extract_strided_slice %93 {offsets = [0, 0], sizes = [2, 32], strides = [1, 1]} : vector<2x128xf32> to vector<2x32xf32>
    %95 = vector.extract_strided_slice %93 {offsets = [0, 32], sizes = [2, 32], strides = [1, 1]} : vector<2x128xf32> to vector<2x32xf32>
    %96 = vector.extract_strided_slice %93 {offsets = [0, 64], sizes = [2, 32], strides = [1, 1]} : vector<2x128xf32> to vector<2x32xf32>
    %cst_35 = arith.constant 2.000000e+00 : f32
    %97 = vector.broadcast %cst_35 : f32 to vector<2x32xf32>
    %98 = arith.mulf %97, %96 : vector<2x32xf32>
    %cst_36 = arith.constant 1.000000e+00 : f32
    %99 = vector.broadcast %cst_36 : f32 to vector<2x32xf32>
    %100 = arith.subf %98, %99 : vector<2x32xf32>
    %101 = vector.extract_strided_slice %93 {offsets = [0, 96], sizes = [2, 32], strides = [1, 1]} : vector<2x128xf32> to vector<2x32xf32>
    %102 = arith.mulf %95, %59 : vector<2x32xf32>
    %103 = arith.mulf %94, %100 : vector<2x32xf32>
    %104 = arith.addf %102, %103 : vector<2x32xf32>
    %105 = math.tanh %104 : vector<2x32xf32>
    %106 = arith.mulf %101, %105 : vector<2x32xf32>
    %cst_37 = arith.constant dense<0.000000e+00> : vector<2x128xf32>
    %107 = tpu.matmul %106, %15, %cst_37 {dimension_numbers = #tpu.dot_dimension_numbers<[1], [0], [0], [1], [0, 0, 1, 1], [], []>} : vector<2x32xf32>, vector<32x128xf32>, vector<2x128xf32> -> vector<2x128xf32>
    %108 = vector.extract_strided_slice %12 {offsets = [4, 0], sizes = [2, 128], strides = [1, 1]} : vector<16x128xf32> to vector<2x128xf32>
    %109 = arith.addf %108, %84 : vector<2x128xf32>
    %110 = arith.negf %109 : vector<2x128xf32>
    %111 = math.exp %110 : vector<2x128xf32>
    %cst_38 = arith.constant 1.000000e+00 : f32
    %112 = vector.broadcast %cst_38 : f32 to vector<2x128xf32>
    %113 = arith.addf %112, %111 : vector<2x128xf32>
    %114 = arith.divf %112, %113 : vector<2x128xf32>
    %115 = vector.extract_strided_slice %114 {offsets = [0, 0], sizes = [2, 32], strides = [1, 1]} : vector<2x128xf32> to vector<2x32xf32>
    %116 = vector.extract_strided_slice %114 {offsets = [0, 32], sizes = [2, 32], strides = [1, 1]} : vector<2x128xf32> to vector<2x32xf32>
    %117 = vector.extract_strided_slice %114 {offsets = [0, 64], sizes = [2, 32], strides = [1, 1]} : vector<2x128xf32> to vector<2x32xf32>
    %cst_39 = arith.constant 2.000000e+00 : f32
    %118 = vector.broadcast %cst_39 : f32 to vector<2x32xf32>
    %119 = arith.mulf %118, %117 : vector<2x32xf32>
    %cst_40 = arith.constant 1.000000e+00 : f32
    %120 = vector.broadcast %cst_40 : f32 to vector<2x32xf32>
    %121 = arith.subf %119, %120 : vector<2x32xf32>
    %122 = vector.extract_strided_slice %114 {offsets = [0, 96], sizes = [2, 32], strides = [1, 1]} : vector<2x128xf32> to vector<2x32xf32>
    %123 = arith.mulf %116, %80 : vector<2x32xf32>
    %124 = arith.mulf %115, %121 : vector<2x32xf32>
    %125 = arith.addf %123, %124 : vector<2x32xf32>
    %126 = math.tanh %125 : vector<2x32xf32>
    %127 = arith.mulf %122, %126 : vector<2x32xf32>
    %cst_41 = arith.constant dense<0.000000e+00> : vector<2x256xf32>
    %128 = tpu.matmul %127, %13, %cst_41 {dimension_numbers = #tpu.dot_dimension_numbers<[1], [0], [0], [1], [0, 0, 1, 1], [], []>} : vector<2x32xf32>, vector<32x256xf32>, vector<2x256xf32> -> vector<2x256xf32>
    %129 = vector.extract_strided_slice %128 {offsets = [0, 0], sizes = [2, 128], strides = [1, 1]} : vector<2x256xf32> to vector<2x128xf32>
    %130 = vector.extract_strided_slice %128 {offsets = [0, 128], sizes = [2, 128], strides = [1, 1]} : vector<2x256xf32> to vector<2x128xf32>
    %131 = arith.addf %130, %107 : vector<2x128xf32>
    %132 = vector.broadcast %14 : vector<1x128xf32> to vector<2x128xf32>
    %133 = arith.addf %131, %132 : vector<2x128xf32>
    %134 = arith.negf %133 : vector<2x128xf32>
    %135 = math.exp %134 : vector<2x128xf32>
    %cst_42 = arith.constant 1.000000e+00 : f32
    %136 = vector.broadcast %cst_42 : f32 to vector<2x128xf32>
    %137 = arith.addf %136, %135 : vector<2x128xf32>
    %138 = arith.divf %136, %137 : vector<2x128xf32>
    %139 = vector.extract_strided_slice %138 {offsets = [0, 0], sizes = [2, 32], strides = [1, 1]} : vector<2x128xf32> to vector<2x32xf32>
    %140 = vector.extract_strided_slice %138 {offsets = [0, 32], sizes = [2, 32], strides = [1, 1]} : vector<2x128xf32> to vector<2x32xf32>
    %141 = vector.extract_strided_slice %138 {offsets = [0, 64], sizes = [2, 32], strides = [1, 1]} : vector<2x128xf32> to vector<2x32xf32>
    %cst_43 = arith.constant 2.000000e+00 : f32
    %142 = vector.broadcast %cst_43 : f32 to vector<2x32xf32>
    %143 = arith.mulf %142, %141 : vector<2x32xf32>
    %cst_44 = arith.constant 1.000000e+00 : f32
    %144 = vector.broadcast %cst_44 : f32 to vector<2x32xf32>
    %145 = arith.subf %143, %144 : vector<2x32xf32>
    %146 = vector.extract_strided_slice %138 {offsets = [0, 96], sizes = [2, 32], strides = [1, 1]} : vector<2x128xf32> to vector<2x32xf32>
    %147 = arith.mulf %140, %104 : vector<2x32xf32>
    %148 = arith.mulf %139, %145 : vector<2x32xf32>
    %149 = arith.addf %147, %148 : vector<2x32xf32>
    %150 = math.tanh %149 : vector<2x32xf32>
    %151 = arith.mulf %146, %150 : vector<2x32xf32>
    %cst_45 = arith.constant dense<0.000000e+00> : vector<2x128xf32>
    %152 = tpu.matmul %151, %15, %cst_45 {dimension_numbers = #tpu.dot_dimension_numbers<[1], [0], [0], [1], [0, 0, 1, 1], [], []>} : vector<2x32xf32>, vector<32x128xf32>, vector<2x128xf32> -> vector<2x128xf32>
    %153 = vector.extract_strided_slice %12 {offsets = [6, 0], sizes = [2, 128], strides = [1, 1]} : vector<16x128xf32> to vector<2x128xf32>
    %154 = arith.addf %153, %129 : vector<2x128xf32>
    %155 = arith.negf %154 : vector<2x128xf32>
    %156 = math.exp %155 : vector<2x128xf32>
    %cst_46 = arith.constant 1.000000e+00 : f32
    %157 = vector.broadcast %cst_46 : f32 to vector<2x128xf32>
    %158 = arith.addf %157, %156 : vector<2x128xf32>
    %159 = arith.divf %157, %158 : vector<2x128xf32>
    %160 = vector.extract_strided_slice %159 {offsets = [0, 0], sizes = [2, 32], strides = [1, 1]} : vector<2x128xf32> to vector<2x32xf32>
    %161 = vector.extract_strided_slice %159 {offsets = [0, 32], sizes = [2, 32], strides = [1, 1]} : vector<2x128xf32> to vector<2x32xf32>
    %162 = vector.extract_strided_slice %159 {offsets = [0, 64], sizes = [2, 32], strides = [1, 1]} : vector<2x128xf32> to vector<2x32xf32>
    %cst_47 = arith.constant 2.000000e+00 : f32
    %163 = vector.broadcast %cst_47 : f32 to vector<2x32xf32>
    %164 = arith.mulf %163, %162 : vector<2x32xf32>
    %cst_48 = arith.constant 1.000000e+00 : f32
    %165 = vector.broadcast %cst_48 : f32 to vector<2x32xf32>
    %166 = arith.subf %164, %165 : vector<2x32xf32>
    %167 = vector.extract_strided_slice %159 {offsets = [0, 96], sizes = [2, 32], strides = [1, 1]} : vector<2x128xf32> to vector<2x32xf32>
    %168 = arith.mulf %161, %125 : vector<2x32xf32>
    %169 = arith.mulf %160, %166 : vector<2x32xf32>
    %170 = arith.addf %168, %169 : vector<2x32xf32>
    %171 = math.tanh %170 : vector<2x32xf32>
    %172 = arith.mulf %167, %171 : vector<2x32xf32>
    %cst_49 = arith.constant dense<0.000000e+00> : vector<2x256xf32>
    %173 = tpu.matmul %172, %13, %cst_49 {dimension_numbers = #tpu.dot_dimension_numbers<[1], [0], [0], [1], [0, 0, 1, 1], [], []>} : vector<2x32xf32>, vector<32x256xf32>, vector<2x256xf32> -> vector<2x256xf32>
    %174 = vector.extract_strided_slice %173 {offsets = [0, 0], sizes = [2, 128], strides = [1, 1]} : vector<2x256xf32> to vector<2x128xf32>
    %175 = vector.extract_strided_slice %173 {offsets = [0, 128], sizes = [2, 128], strides = [1, 1]} : vector<2x256xf32> to vector<2x128xf32>
    %176 = arith.addf %175, %152 : vector<2x128xf32>
    %177 = vector.broadcast %14 : vector<1x128xf32> to vector<2x128xf32>
    %178 = arith.addf %176, %177 : vector<2x128xf32>
    %179 = arith.negf %178 : vector<2x128xf32>
    %180 = math.exp %179 : vector<2x128xf32>
    %cst_50 = arith.constant 1.000000e+00 : f32
    %181 = vector.broadcast %cst_50 : f32 to vector<2x128xf32>
    %182 = arith.addf %181, %180 : vector<2x128xf32>
    %183 = arith.divf %181, %182 : vector<2x128xf32>
    %184 = vector.extract_strided_slice %183 {offsets = [0, 0], sizes = [2, 32], strides = [1, 1]} : vector<2x128xf32> to vector<2x32xf32>
    %185 = vector.extract_strided_slice %183 {offsets = [0, 32], sizes = [2, 32], strides = [1, 1]} : vector<2x128xf32> to vector<2x32xf32>
    %186 = vector.extract_strided_slice %183 {offsets = [0, 64], sizes = [2, 32], strides = [1, 1]} : vector<2x128xf32> to vector<2x32xf32>
    %cst_51 = arith.constant 2.000000e+00 : f32
    %187 = vector.broadcast %cst_51 : f32 to vector<2x32xf32>
    %188 = arith.mulf %187, %186 : vector<2x32xf32>
    %cst_52 = arith.constant 1.000000e+00 : f32
    %189 = vector.broadcast %cst_52 : f32 to vector<2x32xf32>
    %190 = arith.subf %188, %189 : vector<2x32xf32>
    %191 = vector.extract_strided_slice %183 {offsets = [0, 96], sizes = [2, 32], strides = [1, 1]} : vector<2x128xf32> to vector<2x32xf32>
    %192 = arith.mulf %185, %149 : vector<2x32xf32>
    %193 = arith.mulf %184, %190 : vector<2x32xf32>
    %194 = arith.addf %192, %193 : vector<2x32xf32>
    %195 = math.tanh %194 : vector<2x32xf32>
    %196 = arith.mulf %191, %195 : vector<2x32xf32>
    %cst_53 = arith.constant dense<0.000000e+00> : vector<2x128xf32>
    %197 = tpu.matmul %196, %15, %cst_53 {dimension_numbers = #tpu.dot_dimension_numbers<[1], [0], [0], [1], [0, 0, 1, 1], [], []>} : vector<2x32xf32>, vector<32x128xf32>, vector<2x128xf32> -> vector<2x128xf32>
    %198 = vector.extract_strided_slice %12 {offsets = [8, 0], sizes = [2, 128], strides = [1, 1]} : vector<16x128xf32> to vector<2x128xf32>
    %199 = arith.addf %198, %174 : vector<2x128xf32>
    %200 = arith.negf %199 : vector<2x128xf32>
    %201 = math.exp %200 : vector<2x128xf32>
    %cst_54 = arith.constant 1.000000e+00 : f32
    %202 = vector.broadcast %cst_54 : f32 to vector<2x128xf32>
    %203 = arith.addf %202, %201 : vector<2x128xf32>
    %204 = arith.divf %202, %203 : vector<2x128xf32>
    %205 = vector.extract_strided_slice %204 {offsets = [0, 0], sizes = [2, 32], strides = [1, 1]} : vector<2x128xf32> to vector<2x32xf32>
    %206 = vector.extract_strided_slice %204 {offsets = [0, 32], sizes = [2, 32], strides = [1, 1]} : vector<2x128xf32> to vector<2x32xf32>
    %207 = vector.extract_strided_slice %204 {offsets = [0, 64], sizes = [2, 32], strides = [1, 1]} : vector<2x128xf32> to vector<2x32xf32>
    %cst_55 = arith.constant 2.000000e+00 : f32
    %208 = vector.broadcast %cst_55 : f32 to vector<2x32xf32>
    %209 = arith.mulf %208, %207 : vector<2x32xf32>
    %cst_56 = arith.constant 1.000000e+00 : f32
    %210 = vector.broadcast %cst_56 : f32 to vector<2x32xf32>
    %211 = arith.subf %209, %210 : vector<2x32xf32>
    %212 = vector.extract_strided_slice %204 {offsets = [0, 96], sizes = [2, 32], strides = [1, 1]} : vector<2x128xf32> to vector<2x32xf32>
    %213 = arith.mulf %206, %170 : vector<2x32xf32>
    %214 = arith.mulf %205, %211 : vector<2x32xf32>
    %215 = arith.addf %213, %214 : vector<2x32xf32>
    %216 = math.tanh %215 : vector<2x32xf32>
    %217 = arith.mulf %212, %216 : vector<2x32xf32>
    %cst_57 = arith.constant dense<0.000000e+00> : vector<2x256xf32>
    %218 = tpu.matmul %217, %13, %cst_57 {dimension_numbers = #tpu.dot_dimension_numbers<[1], [0], [0], [1], [0, 0, 1, 1], [], []>} : vector<2x32xf32>, vector<32x256xf32>, vector<2x256xf32> -> vector<2x256xf32>
    %219 = vector.extract_strided_slice %218 {offsets = [0, 0], sizes = [2, 128], strides = [1, 1]} : vector<2x256xf32> to vector<2x128xf32>
    %220 = vector.extract_strided_slice %218 {offsets = [0, 128], sizes = [2, 128], strides = [1, 1]} : vector<2x256xf32> to vector<2x128xf32>
    %221 = arith.addf %220, %197 : vector<2x128xf32>
    %222 = vector.broadcast %14 : vector<1x128xf32> to vector<2x128xf32>
    %223 = arith.addf %221, %222 : vector<2x128xf32>
    %224 = arith.negf %223 : vector<2x128xf32>
    %225 = math.exp %224 : vector<2x128xf32>
    %cst_58 = arith.constant 1.000000e+00 : f32
    %226 = vector.broadcast %cst_58 : f32 to vector<2x128xf32>
    %227 = arith.addf %226, %225 : vector<2x128xf32>
    %228 = arith.divf %226, %227 : vector<2x128xf32>
    %229 = vector.extract_strided_slice %228 {offsets = [0, 0], sizes = [2, 32], strides = [1, 1]} : vector<2x128xf32> to vector<2x32xf32>
    %230 = vector.extract_strided_slice %228 {offsets = [0, 32], sizes = [2, 32], strides = [1, 1]} : vector<2x128xf32> to vector<2x32xf32>
    %231 = vector.extract_strided_slice %228 {offsets = [0, 64], sizes = [2, 32], strides = [1, 1]} : vector<2x128xf32> to vector<2x32xf32>
    %cst_59 = arith.constant 2.000000e+00 : f32
    %232 = vector.broadcast %cst_59 : f32 to vector<2x32xf32>
    %233 = arith.mulf %232, %231 : vector<2x32xf32>
    %cst_60 = arith.constant 1.000000e+00 : f32
    %234 = vector.broadcast %cst_60 : f32 to vector<2x32xf32>
    %235 = arith.subf %233, %234 : vector<2x32xf32>
    %236 = vector.extract_strided_slice %228 {offsets = [0, 96], sizes = [2, 32], strides = [1, 1]} : vector<2x128xf32> to vector<2x32xf32>
    %237 = arith.mulf %230, %194 : vector<2x32xf32>
    %238 = arith.mulf %229, %235 : vector<2x32xf32>
    %239 = arith.addf %237, %238 : vector<2x32xf32>
    %240 = math.tanh %239 : vector<2x32xf32>
    %241 = arith.mulf %236, %240 : vector<2x32xf32>
    %cst_61 = arith.constant dense<0.000000e+00> : vector<2x128xf32>
    %242 = tpu.matmul %241, %15, %cst_61 {dimension_numbers = #tpu.dot_dimension_numbers<[1], [0], [0], [1], [0, 0, 1, 1], [], []>} : vector<2x32xf32>, vector<32x128xf32>, vector<2x128xf32> -> vector<2x128xf32>
    %243 = vector.extract_strided_slice %12 {offsets = [10, 0], sizes = [2, 128], strides = [1, 1]} : vector<16x128xf32> to vector<2x128xf32>
    %244 = arith.addf %243, %219 : vector<2x128xf32>
    %245 = arith.negf %244 : vector<2x128xf32>
    %246 = math.exp %245 : vector<2x128xf32>
    %cst_62 = arith.constant 1.000000e+00 : f32
    %247 = vector.broadcast %cst_62 : f32 to vector<2x128xf32>
    %248 = arith.addf %247, %246 : vector<2x128xf32>
    %249 = arith.divf %247, %248 : vector<2x128xf32>
    %250 = vector.extract_strided_slice %249 {offsets = [0, 0], sizes = [2, 32], strides = [1, 1]} : vector<2x128xf32> to vector<2x32xf32>
    %251 = vector.extract_strided_slice %249 {offsets = [0, 32], sizes = [2, 32], strides = [1, 1]} : vector<2x128xf32> to vector<2x32xf32>
    %252 = vector.extract_strided_slice %249 {offsets = [0, 64], sizes = [2, 32], strides = [1, 1]} : vector<2x128xf32> to vector<2x32xf32>
    %cst_63 = arith.constant 2.000000e+00 : f32
    %253 = vector.broadcast %cst_63 : f32 to vector<2x32xf32>
    %254 = arith.mulf %253, %252 : vector<2x32xf32>
    %cst_64 = arith.constant 1.000000e+00 : f32
    %255 = vector.broadcast %cst_64 : f32 to vector<2x32xf32>
    %256 = arith.subf %254, %255 : vector<2x32xf32>
    %257 = vector.extract_strided_slice %249 {offsets = [0, 96], sizes = [2, 32], strides = [1, 1]} : vector<2x128xf32> to vector<2x32xf32>
    %258 = arith.mulf %251, %215 : vector<2x32xf32>
    %259 = arith.mulf %250, %256 : vector<2x32xf32>
    %260 = arith.addf %258, %259 : vector<2x32xf32>
    %261 = math.tanh %260 : vector<2x32xf32>
    %262 = arith.mulf %257, %261 : vector<2x32xf32>
    %cst_65 = arith.constant dense<0.000000e+00> : vector<2x256xf32>
    %263 = tpu.matmul %262, %13, %cst_65 {dimension_numbers = #tpu.dot_dimension_numbers<[1], [0], [0], [1], [0, 0, 1, 1], [], []>} : vector<2x32xf32>, vector<32x256xf32>, vector<2x256xf32> -> vector<2x256xf32>
    %264 = vector.extract_strided_slice %263 {offsets = [0, 0], sizes = [2, 128], strides = [1, 1]} : vector<2x256xf32> to vector<2x128xf32>
    %265 = vector.extract_strided_slice %263 {offsets = [0, 128], sizes = [2, 128], strides = [1, 1]} : vector<2x256xf32> to vector<2x128xf32>
    %266 = arith.addf %265, %242 : vector<2x128xf32>
    %267 = vector.broadcast %14 : vector<1x128xf32> to vector<2x128xf32>
    %268 = arith.addf %266, %267 : vector<2x128xf32>
    %269 = arith.negf %268 : vector<2x128xf32>
    %270 = math.exp %269 : vector<2x128xf32>
    %cst_66 = arith.constant 1.000000e+00 : f32
    %271 = vector.broadcast %cst_66 : f32 to vector<2x128xf32>
    %272 = arith.addf %271, %270 : vector<2x128xf32>
    %273 = arith.divf %271, %272 : vector<2x128xf32>
    %274 = vector.extract_strided_slice %273 {offsets = [0, 0], sizes = [2, 32], strides = [1, 1]} : vector<2x128xf32> to vector<2x32xf32>
    %275 = vector.extract_strided_slice %273 {offsets = [0, 32], sizes = [2, 32], strides = [1, 1]} : vector<2x128xf32> to vector<2x32xf32>
    %276 = vector.extract_strided_slice %273 {offsets = [0, 64], sizes = [2, 32], strides = [1, 1]} : vector<2x128xf32> to vector<2x32xf32>
    %cst_67 = arith.constant 2.000000e+00 : f32
    %277 = vector.broadcast %cst_67 : f32 to vector<2x32xf32>
    %278 = arith.mulf %277, %276 : vector<2x32xf32>
    %cst_68 = arith.constant 1.000000e+00 : f32
    %279 = vector.broadcast %cst_68 : f32 to vector<2x32xf32>
    %280 = arith.subf %278, %279 : vector<2x32xf32>
    %281 = vector.extract_strided_slice %273 {offsets = [0, 96], sizes = [2, 32], strides = [1, 1]} : vector<2x128xf32> to vector<2x32xf32>
    %282 = arith.mulf %275, %239 : vector<2x32xf32>
    %283 = arith.mulf %274, %280 : vector<2x32xf32>
    %284 = arith.addf %282, %283 : vector<2x32xf32>
    %285 = math.tanh %284 : vector<2x32xf32>
    %286 = arith.mulf %281, %285 : vector<2x32xf32>
    %cst_69 = arith.constant dense<0.000000e+00> : vector<2x128xf32>
    %287 = tpu.matmul %286, %15, %cst_69 {dimension_numbers = #tpu.dot_dimension_numbers<[1], [0], [0], [1], [0, 0, 1, 1], [], []>} : vector<2x32xf32>, vector<32x128xf32>, vector<2x128xf32> -> vector<2x128xf32>
    %288 = vector.extract_strided_slice %12 {offsets = [12, 0], sizes = [2, 128], strides = [1, 1]} : vector<16x128xf32> to vector<2x128xf32>
    %289 = arith.addf %288, %264 : vector<2x128xf32>
    %290 = arith.negf %289 : vector<2x128xf32>
    %291 = math.exp %290 : vector<2x128xf32>
    %cst_70 = arith.constant 1.000000e+00 : f32
    %292 = vector.broadcast %cst_70 : f32 to vector<2x128xf32>
    %293 = arith.addf %292, %291 : vector<2x128xf32>
    %294 = arith.divf %292, %293 : vector<2x128xf32>
    %295 = vector.extract_strided_slice %294 {offsets = [0, 0], sizes = [2, 32], strides = [1, 1]} : vector<2x128xf32> to vector<2x32xf32>
    %296 = vector.extract_strided_slice %294 {offsets = [0, 32], sizes = [2, 32], strides = [1, 1]} : vector<2x128xf32> to vector<2x32xf32>
    %297 = vector.extract_strided_slice %294 {offsets = [0, 64], sizes = [2, 32], strides = [1, 1]} : vector<2x128xf32> to vector<2x32xf32>
    %cst_71 = arith.constant 2.000000e+00 : f32
    %298 = vector.broadcast %cst_71 : f32 to vector<2x32xf32>
    %299 = arith.mulf %298, %297 : vector<2x32xf32>
    %cst_72 = arith.constant 1.000000e+00 : f32
    %300 = vector.broadcast %cst_72 : f32 to vector<2x32xf32>
    %301 = arith.subf %299, %300 : vector<2x32xf32>
    %302 = vector.extract_strided_slice %294 {offsets = [0, 96], sizes = [2, 32], strides = [1, 1]} : vector<2x128xf32> to vector<2x32xf32>
    %303 = arith.mulf %296, %260 : vector<2x32xf32>
    %304 = arith.mulf %295, %301 : vector<2x32xf32>
    %305 = arith.addf %303, %304 : vector<2x32xf32>
    %306 = math.tanh %305 : vector<2x32xf32>
    %307 = arith.mulf %302, %306 : vector<2x32xf32>
    %cst_73 = arith.constant dense<0.000000e+00> : vector<2x256xf32>
    %308 = tpu.matmul %307, %13, %cst_73 {dimension_numbers = #tpu.dot_dimension_numbers<[1], [0], [0], [1], [0, 0, 1, 1], [], []>} : vector<2x32xf32>, vector<32x256xf32>, vector<2x256xf32> -> vector<2x256xf32>
    %309 = vector.extract_strided_slice %308 {offsets = [0, 0], sizes = [2, 128], strides = [1, 1]} : vector<2x256xf32> to vector<2x128xf32>
    %310 = vector.extract_strided_slice %308 {offsets = [0, 128], sizes = [2, 128], strides = [1, 1]} : vector<2x256xf32> to vector<2x128xf32>
    %311 = arith.addf %310, %287 : vector<2x128xf32>
    %312 = vector.broadcast %14 : vector<1x128xf32> to vector<2x128xf32>
    %313 = arith.addf %311, %312 : vector<2x128xf32>
    %314 = arith.negf %313 : vector<2x128xf32>
    %315 = math.exp %314 : vector<2x128xf32>
    %cst_74 = arith.constant 1.000000e+00 : f32
    %316 = vector.broadcast %cst_74 : f32 to vector<2x128xf32>
    %317 = arith.addf %316, %315 : vector<2x128xf32>
    %318 = arith.divf %316, %317 : vector<2x128xf32>
    %319 = vector.extract_strided_slice %318 {offsets = [0, 0], sizes = [2, 32], strides = [1, 1]} : vector<2x128xf32> to vector<2x32xf32>
    %320 = vector.extract_strided_slice %318 {offsets = [0, 32], sizes = [2, 32], strides = [1, 1]} : vector<2x128xf32> to vector<2x32xf32>
    %321 = vector.extract_strided_slice %318 {offsets = [0, 64], sizes = [2, 32], strides = [1, 1]} : vector<2x128xf32> to vector<2x32xf32>
    %cst_75 = arith.constant 2.000000e+00 : f32
    %322 = vector.broadcast %cst_75 : f32 to vector<2x32xf32>
    %323 = arith.mulf %322, %321 : vector<2x32xf32>
    %cst_76 = arith.constant 1.000000e+00 : f32
    %324 = vector.broadcast %cst_76 : f32 to vector<2x32xf32>
    %325 = arith.subf %323, %324 : vector<2x32xf32>
    %326 = vector.extract_strided_slice %318 {offsets = [0, 96], sizes = [2, 32], strides = [1, 1]} : vector<2x128xf32> to vector<2x32xf32>
    %327 = arith.mulf %320, %284 : vector<2x32xf32>
    %328 = arith.mulf %319, %325 : vector<2x32xf32>
    %329 = arith.addf %327, %328 : vector<2x32xf32>
    %330 = math.tanh %329 : vector<2x32xf32>
    %331 = arith.mulf %326, %330 : vector<2x32xf32>
    %cst_77 = arith.constant dense<0.000000e+00> : vector<2x128xf32>
    %332 = tpu.matmul %331, %15, %cst_77 {dimension_numbers = #tpu.dot_dimension_numbers<[1], [0], [0], [1], [0, 0, 1, 1], [], []>} : vector<2x32xf32>, vector<32x128xf32>, vector<2x128xf32> -> vector<2x128xf32>
    %333 = vector.extract_strided_slice %12 {offsets = [14, 0], sizes = [2, 128], strides = [1, 1]} : vector<16x128xf32> to vector<2x128xf32>
    %334 = arith.addf %333, %309 : vector<2x128xf32>
    %335 = arith.negf %334 : vector<2x128xf32>
    %336 = math.exp %335 : vector<2x128xf32>
    %cst_78 = arith.constant 1.000000e+00 : f32
    %337 = vector.broadcast %cst_78 : f32 to vector<2x128xf32>
    %338 = arith.addf %337, %336 : vector<2x128xf32>
    %339 = arith.divf %337, %338 : vector<2x128xf32>
    %340 = vector.extract_strided_slice %339 {offsets = [0, 0], sizes = [2, 32], strides = [1, 1]} : vector<2x128xf32> to vector<2x32xf32>
    %341 = vector.extract_strided_slice %339 {offsets = [0, 32], sizes = [2, 32], strides = [1, 1]} : vector<2x128xf32> to vector<2x32xf32>
    %342 = vector.extract_strided_slice %339 {offsets = [0, 64], sizes = [2, 32], strides = [1, 1]} : vector<2x128xf32> to vector<2x32xf32>
    %cst_79 = arith.constant 2.000000e+00 : f32
    %343 = vector.broadcast %cst_79 : f32 to vector<2x32xf32>
    %344 = arith.mulf %343, %342 : vector<2x32xf32>
    %cst_80 = arith.constant 1.000000e+00 : f32
    %345 = vector.broadcast %cst_80 : f32 to vector<2x32xf32>
    %346 = arith.subf %344, %345 : vector<2x32xf32>
    %347 = vector.extract_strided_slice %339 {offsets = [0, 96], sizes = [2, 32], strides = [1, 1]} : vector<2x128xf32> to vector<2x32xf32>
    %348 = arith.mulf %341, %305 : vector<2x32xf32>
    %349 = arith.mulf %340, %346 : vector<2x32xf32>
    %350 = arith.addf %348, %349 : vector<2x32xf32>
    %351 = math.tanh %350 : vector<2x32xf32>
    %352 = arith.mulf %347, %351 : vector<2x32xf32>
    %cst_81 = arith.constant dense<0.000000e+00> : vector<2x256xf32>
    %353 = tpu.matmul %352, %13, %cst_81 {dimension_numbers = #tpu.dot_dimension_numbers<[1], [0], [0], [1], [0, 0, 1, 1], [], []>} : vector<2x32xf32>, vector<32x256xf32>, vector<2x256xf32> -> vector<2x256xf32>
    %354 = vector.extract_strided_slice %353 {offsets = [0, 128], sizes = [2, 128], strides = [1, 1]} : vector<2x256xf32> to vector<2x128xf32>
    %355 = arith.addf %354, %332 : vector<2x128xf32>
    %356 = vector.broadcast %14 : vector<1x128xf32> to vector<2x128xf32>
    %357 = arith.addf %355, %356 : vector<2x128xf32>
    %358 = arith.negf %357 : vector<2x128xf32>
    %359 = math.exp %358 : vector<2x128xf32>
    %cst_82 = arith.constant 1.000000e+00 : f32
    %360 = vector.broadcast %cst_82 : f32 to vector<2x128xf32>
    %361 = arith.addf %360, %359 : vector<2x128xf32>
    %362 = arith.divf %360, %361 : vector<2x128xf32>
    %363 = vector.extract_strided_slice %362 {offsets = [0, 0], sizes = [2, 32], strides = [1, 1]} : vector<2x128xf32> to vector<2x32xf32>
    %364 = vector.extract_strided_slice %362 {offsets = [0, 32], sizes = [2, 32], strides = [1, 1]} : vector<2x128xf32> to vector<2x32xf32>
    %365 = vector.extract_strided_slice %362 {offsets = [0, 64], sizes = [2, 32], strides = [1, 1]} : vector<2x128xf32> to vector<2x32xf32>
    %cst_83 = arith.constant 2.000000e+00 : f32
    %366 = vector.broadcast %cst_83 : f32 to vector<2x32xf32>
    %367 = arith.mulf %366, %365 : vector<2x32xf32>
    %cst_84 = arith.constant 1.000000e+00 : f32
    %368 = vector.broadcast %cst_84 : f32 to vector<2x32xf32>
    %369 = arith.subf %367, %368 : vector<2x32xf32>
    %370 = vector.extract_strided_slice %362 {offsets = [0, 96], sizes = [2, 32], strides = [1, 1]} : vector<2x128xf32> to vector<2x32xf32>
    %371 = arith.mulf %364, %329 : vector<2x32xf32>
    %372 = arith.mulf %363, %369 : vector<2x32xf32>
    %373 = arith.addf %371, %372 : vector<2x32xf32>
    %374 = math.tanh %373 : vector<2x32xf32>
    %375 = arith.mulf %370, %374 : vector<2x32xf32>
    %c0_85 = arith.constant 0 : index
    %c0_86 = arith.constant 0 : index
    %376 = vector.load %arg9[%c0_85, %c0_86] : memref<32x32xf32, #tpu.memory_space<vmem>>, vector<32x32xf32>
    %cst_87 = arith.constant dense<0.000000e+00> : vector<2x32xf32>
    %377 = tpu.matmul %375, %376, %cst_87 {dimension_numbers = #tpu.dot_dimension_numbers<[1], [0], [0], [1], [0, 0, 1, 1], [], []>} : vector<2x32xf32>, vector<32x32xf32>, vector<2x32xf32> -> vector<2x32xf32>
    %c0_88 = arith.constant 0 : index
    %c0_89 = arith.constant 0 : index
    %378 = vector.load %arg10[%c0_88, %c0_89] : memref<1x32xf32, #tpu.memory_space<vmem>>, vector<1x32xf32>
    %379 = vector.broadcast %378 : vector<1x32xf32> to vector<2x32xf32>
    %380 = arith.addf %377, %379 : vector<2x32xf32>
    %c0_90 = arith.constant 0 : index
    %c0_91 = arith.constant 0 : index
    %381 = vector.load %arg12[%c0_90, %c0_91] : memref<2x32xf32, #tpu.memory_space<vmem>>, vector<2x32xf32>
    tpu.vector_store %arg12[%c0_90, %c0_91], %380 {strides = array<i32>} : memref<2x32xf32, #tpu.memory_space<vmem>>, vector<2x32xf32>,
    return
  }
}

</mosaic_0001>

<llo_original>
// kernel: tpu_custom_call.1
$region0: #{tpu_custom_call.1}
  #allocation0 [shape = 'u32[]', space=smem, size = 0x4, offset = 0x4, fixed_abs, tag = 'smem constant byte address 0x4 - core index']
  #allocation1 [shape = 'u32[72,128]{1,0:T(1,128)}', space=vmem, size = 0x9000, scoped, tag = 'internal scratch']
  %s0 = inlined_call_operand.vmem [shape: f32[2,768], index: 0, kind: input, shape index: {}]
  %s1 = inlined_call_operand.vmem [shape: f32[768,32], index: 1, kind: input, shape index: {}]
  %s2 = inlined_call_operand.vmem [shape: f32[1,32], index: 2, kind: input, shape index: {}]
  %s3 = inlined_call_operand.vmem [shape: f32[16,16], index: 3, kind: input, shape index: {}]
  %s4 = inlined_call_operand.vmem [shape: f32[16,128], index: 4, kind: input, shape index: {}]
  %s5 = inlined_call_operand.vmem [shape: f32[1,128], index: 5, kind: input, shape index: {}]
  %s6 = inlined_call_operand.vmem [shape: f32[32,256], index: 6, kind: input, shape index: {}]
  %s7 = inlined_call_operand.vmem [shape: f32[1,128], index: 7, kind: input, shape index: {}]
  %s8 = inlined_call_operand.vmem [shape: f32[32,128], index: 8, kind: input, shape index: {}]
  %s9 = inlined_call_operand.vmem [shape: f32[32,32], index: 9, kind: input, shape index: {}]
  %s10 = inlined_call_operand.vmem [shape: f32[1,32], index: 10, kind: input, shape index: {}]
  %s11 = inlined_call_operand.hbm [shape: f32[2,32], index: 11, kind: output, shape index: {0}]
  %s12 = inlined_call_operand.hbm [shape: f32[2,32], index: 12, kind: output, shape index: {1}]
  %13 = xla_tuple %s11, %s12
  %s14 = sld [smem:[#allocation0]]
  $region62: #{tpu_custom_call.1} parent=0
    _
  %s16 = ssub.s32 1, %s14
  %s17 = scalar_select 0, %s16, %s14
  $region1: #{tpu_custom_call.1} parent=0
    #allocation2 [shape = 'u8[1024]{0}', space=vmem, size = 0x400, scoped, tag = 'output window, operand 0, single buffered']
    #allocation3 [shape = 's32[1]{0}', space=sflag, size = 0x4, scoped, tag = 'scoped memory for tpu_custom_call.1']
    #allocation4 [shape = 'u8[1024]{0}', space=vmem, size = 0x400, scoped, tag = 'output window, operand 1, single buffered']
    #allocation5 [shape = 's32[1]{0}', space=sflag, size = 0x4, scoped, tag = 'scoped memory for tpu_custom_call.1']
    %18 = vsyncpa [#allocation3], 0
    %19 = vsyncpa [#allocation5], 0
    // Predicated region
    $region2: #{tpu_custom_call.1} parent=1 // pred_check
      _
    $region3: #{tpu_custom_call.1} parent=1 // pred_check_branch
      %21 = sbr.rel (0) target = $region5
    $region4: #{tpu_custom_call.1} parent=1 // pred_region
      _
    $region5: #{tpu_custom_call.1} parent=1 // pred_fallthru
      _
    // Predicated region
    $region6: #{tpu_custom_call.1} parent=1 // pred_check
      _
    $region7: #{tpu_custom_call.1} parent=1 // pred_check_branch
      %23 = sbr.rel (0) target = $region9
    $region8: #{tpu_custom_call.1} parent=1 // pred_region
      _
    $region9: #{tpu_custom_call.1} parent=1 // pred_fallthru
      _
    // Predicated region
    $region10: #{tpu_custom_call.1} parent=1 // pred_check
      _
    $region11: #{tpu_custom_call.1} parent=1 // pred_check_branch
      %25 = sbr.rel (0) target = $region13
    $region12: #{tpu_custom_call.1} parent=1 // pred_region
      _
    $region13: #{tpu_custom_call.1} parent=1 // pred_fallthru
      _
    // Predicated region
    $region14: #{tpu_custom_call.1} parent=1 // pred_check
      _
    $region15: #{tpu_custom_call.1} parent=1 // pred_check_branch
      %27 = sbr.rel (0) target = $region17
    $region16: #{tpu_custom_call.1} parent=1 // pred_region
      _
    $region17: #{tpu_custom_call.1} parent=1 // pred_fallthru
      _
    // Predicated region
    $region18: #{tpu_custom_call.1} parent=1 // pred_check
      _
    $region19: #{tpu_custom_call.1} parent=1 // pred_check_branch
      %29 = sbr.rel (0) target = $region21
    $region20: #{tpu_custom_call.1} parent=1 // pred_region
      _
    $region21: #{tpu_custom_call.1} parent=1 // pred_fallthru
      _
    // Predicated region
    $region22: #{tpu_custom_call.1} parent=1 // pred_check
      _
    $region23: #{tpu_custom_call.1} parent=1 // pred_check_branch
      %31 = sbr.rel (0) target = $region25
    $region24: #{tpu_custom_call.1} parent=1 // pred_region
      _
    $region25: #{tpu_custom_call.1} parent=1 // pred_fallthru
      _
    // Predicated region
    $region26: #{tpu_custom_call.1} parent=1 // pred_check
      _
    $region27: #{tpu_custom_call.1} parent=1 // pred_check_branch
      %33 = sbr.rel (0) target = $region29
    $region28: #{tpu_custom_call.1} parent=1 // pred_region
      _
    $region29: #{tpu_custom_call.1} parent=1 // pred_fallthru
      _
    // Predicated region
    $region30: #{tpu_custom_call.1} parent=1 // pred_check
      _
    $region31: #{tpu_custom_call.1} parent=1 // pred_check_branch
      %35 = sbr.rel (0) target = $region33
    $region32: #{tpu_custom_call.1} parent=1 // pred_region
      _
    $region33: #{tpu_custom_call.1} parent=1 // pred_fallthru
      _
    // Predicated region
    $region34: #{tpu_custom_call.1} parent=1 // pred_check
      _
    $region35: #{tpu_custom_call.1} parent=1 // pred_check_branch
      %37 = sbr.rel (0) target = $region37
    $region36: #{tpu_custom_call.1} parent=1 // pred_region
      _
    $region37: #{tpu_custom_call.1} parent=1 // pred_fallthru
      _
    // Predicated region
    $region38: #{tpu_custom_call.1} parent=1 // pred_check
      _
    $region39: #{tpu_custom_call.1} parent=1 // pred_check_branch
      %39 = sbr.rel (0) target = $region41
    $region40: #{tpu_custom_call.1} parent=1 // pred_region
      _
    $region41: #{tpu_custom_call.1} parent=1 // pred_fallthru
      _
    // Predicated region
    $region42: #{tpu_custom_call.1} parent=1 // pred_check
      _
    $region43: #{tpu_custom_call.1} parent=1 // pred_check_branch
      %41 = sbr.rel (0) target = $region45
    $region44: #{tpu_custom_call.1} parent=1 // pred_region
      _
    $region45: #{tpu_custom_call.1} parent=1 // pred_fallthru
      _
    %v42 = vld [vmem:[%s0] sm:$0xff]
    %v43 = vld [vmem:[%s0 + $0x8] sm:$0xf]
    %v44 = vld [vmem:[%s1] sm:$0xff]
    %v45 = vld [vmem:[%s1 + $0x8] sm:$0xff]
    %v46 = vld [vmem:[%s1 + $0x10] sm:$0xff]
    %v47 = vld [vmem:[%s1 + $0x18] sm:$0xff]
    %v48 = vld [vmem:[%s1 + $0x20] sm:$0xff]
    %v49 = vld [vmem:[%s1 + $0x28] sm:$0xff]
    %v50 = vld [vmem:[%s1 + $0x30] sm:$0xff]
    %v51 = vld [vmem:[%s1 + $0x38] sm:$0xff]
    %v52 = vld [vmem:[%s1 + $0x40] sm:$0xff]
    %v53 = vld [vmem:[%s1 + $0x48] sm:$0xff]
    %v54 = vld [vmem:[%s1 + $0x50] sm:$0xff]
    %v55 = vld [vmem:[%s1 + $0x58] sm:$0xff]
    %v56 = vld [vmem:[%s1 + $0x60] sm:$0xff]
    %v57 = vld [vmem:[%s1 + $0x68] sm:$0xff]
    %v58 = vld [vmem:[%s1 + $0x70] sm:$0xff]
    %v59 = vld [vmem:[%s1 + $0x78] sm:$0xff]
    %v60 = vld [vmem:[%s1 + $0x80] sm:$0xff]
    %v61 = vld [vmem:[%s1 + $0x88] sm:$0xff]
    %v62 = vld [vmem:[%s1 + $0x90] sm:$0xff]
    %v63 = vld [vmem:[%s1 + $0x98] sm:$0xff]
    %v64 = vld [vmem:[%s1 + $0xa0] sm:$0xff]
    %v65 = vld [vmem:[%s1 + $0xa8] sm:$0xff]
    %v66 = vld [vmem:[%s1 + $0xb0] sm:$0xff]
    %v67 = vld [vmem:[%s1 + $0xb8] sm:$0xff]
    %v68 = vld [vmem:[%s1 + $0xc0] sm:$0xff]
    %v69 = vld [vmem:[%s1 + $0xc8] sm:$0xff]
    %v70 = vld [vmem:[%s1 + $0xd0] sm:$0xff]
    %v71 = vld [vmem:[%s1 + $0xd8] sm:$0xff]
    %v72 = vld [vmem:[%s1 + $0xe0] sm:$0xff]
    %v73 = vld [vmem:[%s1 + $0xe8] sm:$0xff]
    %v74 = vld [vmem:[%s1 + $0xf0] sm:$0xff]
    %v75 = vld [vmem:[%s1 + $0xf8] sm:$0xff]
    %v76 = vld [vmem:[%s1 + $0x100] sm:$0xff]
    %v77 = vld [vmem:[%s1 + $0x108] sm:$0xff]
    %v78 = vld [vmem:[%s1 + $0x110] sm:$0xff]
    %v79 = vld [vmem:[%s1 + $0x118] sm:$0xff]
    %v80 = vld [vmem:[%s1 + $0x120] sm:$0xff]
    %v81 = vld [vmem:[%s1 + $0x128] sm:$0xff]
    %v82 = vld [vmem:[%s1 + $0x130] sm:$0xff]
    %v83 = vld [vmem:[%s1 + $0x138] sm:$0xff]
    %v84 = vld [vmem:[%s1 + $0x140] sm:$0xff]
    %v85 = vld [vmem:[%s1 + $0x148] sm:$0xff]
    %v86 = vld [vmem:[%s1 + $0x150] sm:$0xff]
    %v87 = vld [vmem:[%s1 + $0x158] sm:$0xff]
    %v88 = vld [vmem:[%s1 + $0x160] sm:$0xff]
    %v89 = vld [vmem:[%s1 + $0x168] sm:$0xff]
    %v90 = vld [vmem:[%s1 + $0x170] sm:$0xff]
    %v91 = vld [vmem:[%s1 + $0x178] sm:$0xff]
    %v92 = vld [vmem:[%s1 + $0x180] sm:$0xff]
    %v93 = vld [vmem:[%s1 + $0x188] sm:$0xff]
    %v94 = vld [vmem:[%s1 + $0x190] sm:$0xff]
    %v95 = vld [vmem:[%s1 + $0x198] sm:$0xff]
    %v96 = vld [vmem:[%s1 + $0x1a0] sm:$0xff]
    %v97 = vld [vmem:[%s1 + $0x1a8] sm:$0xff]
    %v98 = vld [vmem:[%s1 + $0x1b0] sm:$0xff]
    %v99 = vld [vmem:[%s1 + $0x1b8] sm:$0xff]
    %v100 = vld [vmem:[%s1 + $0x1c0] sm:$0xff]
    %v101 = vld [vmem:[%s1 + $0x1c8] sm:$0xff]
    %v102 = vld [vmem:[%s1 + $0x1d0] sm:$0xff]
    %v103 = vld [vmem:[%s1 + $0x1d8] sm:$0xff]
    %v104 = vld [vmem:[%s1 + $0x1e0] sm:$0xff]
    %v105 = vld [vmem:[%s1 + $0x1e8] sm:$0xff]
    %v106 = vld [vmem:[%s1 + $0x1f0] sm:$0xff]
    %v107 = vld [vmem:[%s1 + $0x1f8] sm:$0xff]
    %v108 = vld [vmem:[%s1 + $0x200] sm:$0xff]
    %v109 = vld [vmem:[%s1 + $0x208] sm:$0xff]
    %v110 = vld [vmem:[%s1 + $0x210] sm:$0xff]
    %v111 = vld [vmem:[%s1 + $0x218] sm:$0xff]
    %v112 = vld [vmem:[%s1 + $0x220] sm:$0xff]
    %v113 = vld [vmem:[%s1 + $0x228] sm:$0xff]
    %v114 = vld [vmem:[%s1 + $0x230] sm:$0xff]
    %v115 = vld [vmem:[%s1 + $0x238] sm:$0xff]
    %v116 = vld [vmem:[%s1 + $0x240] sm:$0xff]
    %v117 = vld [vmem:[%s1 + $0x248] sm:$0xff]
    %v118 = vld [vmem:[%s1 + $0x250] sm:$0xff]
    %v119 = vld [vmem:[%s1 + $0x258] sm:$0xff]
    %v120 = vld [vmem:[%s1 + $0x260] sm:$0xff]
    %v121 = vld [vmem:[%s1 + $0x268] sm:$0xff]
    %v122 = vld [vmem:[%s1 + $0x270] sm:$0xff]
    %v123 = vld [vmem:[%s1 + $0x278] sm:$0xff]
    %v124 = vld [vmem:[%s1 + $0x280] sm:$0xff]
    %v125 = vld [vmem:[%s1 + $0x288] sm:$0xff]
    %v126 = vld [vmem:[%s1 + $0x290] sm:$0xff]
    %v127 = vld [vmem:[%s1 + $0x298] sm:$0xff]
    %v128 = vld [vmem:[%s1 + $0x2a0] sm:$0xff]
    %v129 = vld [vmem:[%s1 + $0x2a8] sm:$0xff]
    %v130 = vld [vmem:[%s1 + $0x2b0] sm:$0xff]
    %v131 = vld [vmem:[%s1 + $0x2b8] sm:$0xff]
    %v132 = vld [vmem:[%s1 + $0x2c0] sm:$0xff]
    %v133 = vld [vmem:[%s1 + $0x2c8] sm:$0xff]
    %v134 = vld [vmem:[%s1 + $0x2d0] sm:$0xff]
    %v135 = vld [vmem:[%s1 + $0x2d8] sm:$0xff]
    %v136 = vld [vmem:[%s1 + $0x2e0] sm:$0xff]
    %v137 = vld [vmem:[%s1 + $0x2e8] sm:$0xff]
    %v138 = vld [vmem:[%s1 + $0x2f0] sm:$0xff]
    %v139 = vld [vmem:[%s1 + $0x2f8] sm:$0xff]
    %v140 = vld [vmem:[%s2] sm:$0x1]
    %v142 = vperm.slane %v140, 0
    %146 = vst [vmem:[#allocation1] ss:$4 sm:$0xff] %v42
    %s147 = scalar_lea.vmem [#allocation1], 32
    %148 = vst [vmem:[%s147] ss:$4 sm:$0xff] %v43
    %v149 = vld.sshfl [vmem:[#allocation1] sm:$0xff pattern:$0x73625140]
    %v150 = vld.sshfl [vmem:[#allocation1 + $0x8] sm:$0xff pattern:$0x73625140]
    %v151 = vld.sshfl [vmem:[#allocation1 + $0x10] sm:$0xff pattern:$0x73625140]
    %v152 = vld.sshfl [vmem:[#allocation1 + $0x18] sm:$0xff pattern:$0x73625140]
    %v153 = vld.sshfl [vmem:[#allocation1 + $0x20] sm:$0xff pattern:$0x73625140]
    %v154 = vld.sshfl [vmem:[#allocation1 + $0x28] sm:$0xff pattern:$0x73625140]
    %161 = vmatpush.msra.mxu0 %v59
    %162 = vmatpush.msra.mxu0 %v58
    %163 = vmatpush.msra.mxu0 %v57
    %164 = vmatpush.msra.mxu0 %v56
    %165 = vmatpush.msra.mxu0 %v55
    %166 = vmatpush.msra.mxu0 %v54
    %167 = vmatpush.msra.mxu0 %v53
    %168 = vmatpush.msra.mxu0 %v52
    %169 = vmatpush.msra.mxu0 %v51
    %170 = vmatpush.msra.mxu0 %v50
    %171 = vmatpush.msra.mxu0 %v49
    %172 = vmatpush.msra.mxu0 %v48
    %173 = vmatpush.msra.mxu0 %v47
    %174 = vmatpush.msra.mxu0 %v46
    %175 = vmatpush.msra.mxu0 %v45
    %176 = vmatpush.msra.mxu0 %v44
    %177 = vmatmul.f32.gmra.mxu0 %v149
    %v178 = vpop.f32.mrf.mxu0
    %v179 = vadd.f32 %v142, %v178
    %180 = vdwg.mxu0
    %181 = vmatpush.msra.mxu0 %v75
    %182 = vmatpush.msra.mxu0 %v74
    %183 = vmatpush.msra.mxu0 %v73
    %184 = vmatpush.msra.mxu0 %v72
    %185 = vmatpush.msra.mxu0 %v71
    %186 = vmatpush.msra.mxu0 %v70
    %187 = vmatpush.msra.mxu0 %v69
    %188 = vmatpush.msra.mxu0 %v68
    %189 = vmatpush.msra.mxu0 %v67
    %190 = vmatpush.msra.mxu0 %v66
    %191 = vmatpush.msra.mxu0 %v65
    %192 = vmatpush.msra.mxu0 %v64
    %193 = vmatpush.msra.mxu0 %v63
    %194 = vmatpush.msra.mxu0 %v62
    %195 = vmatpush.msra.mxu0 %v61
    %196 = vmatpush.msra.mxu0 %v60
    %197 = vmatmul.f32.gmra.mxu0 %v150
    %v198 = vpop.f32.mrf.mxu0
    %v199 = vadd.f32 %v179, %v198
    %200 = vdwg.mxu0
    %201 = vmatpush.msra.mxu0 %v91
    %202 = vmatpush.msra.mxu0 %v90
    %203 = vmatpush.msra.mxu0 %v89
    %204 = vmatpush.msra.mxu0 %v88
    %205 = vmatpush.msra.mxu0 %v87
    %206 = vmatpush.msra.mxu0 %v86
    %207 = vmatpush.msra.mxu0 %v85
    %208 = vmatpush.msra.mxu0 %v84
    %209 = vmatpush.msra.mxu0 %v83
    %210 = vmatpush.msra.mxu0 %v82
    %211 = vmatpush.msra.mxu0 %v81
    %212 = vmatpush.msra.mxu0 %v80
    %213 = vmatpush.msra.mxu0 %v79
    %214 = vmatpush.msra.mxu0 %v78
    %215 = vmatpush.msra.mxu0 %v77
    %216 = vmatpush.msra.mxu0 %v76
    %217 = vmatmul.f32.gmra.mxu0 %v151
    %v218 = vpop.f32.mrf.mxu0
    %v219 = vadd.f32 %v199, %v218
    %220 = vdwg.mxu0
    %221 = vmatpush.msra.mxu0 %v107
    %222 = vmatpush.msra.mxu0 %v106
    %223 = vmatpush.msra.mxu0 %v105
    %224 = vmatpush.msra.mxu0 %v104
    %225 = vmatpush.msra.mxu0 %v103
    %226 = vmatpush.msra.mxu0 %v102
    %227 = vmatpush.msra.mxu0 %v101
    %228 = vmatpush.msra.mxu0 %v100
    %229 = vmatpush.msra.mxu0 %v99
    %230 = vmatpush.msra.mxu0 %v98
    %231 = vmatpush.msra.mxu0 %v97
    %232 = vmatpush.msra.mxu0 %v96
    %233 = vmatpush.msra.mxu0 %v95
    %234 = vmatpush.msra.mxu0 %v94
    %235 = vmatpush.msra.mxu0 %v93
    %236 = vmatpush.msra.mxu0 %v92
    %237 = vmatmul.f32.gmra.mxu0 %v152
    %v238 = vpop.f32.mrf.mxu0
    %v239 = vadd.f32 %v219, %v238
    %240 = vdwg.mxu0
    %241 = vmatpush.msra.mxu0 %v123
    %242 = vmatpush.msra.mxu0 %v122
    %243 = vmatpush.msra.mxu0 %v121
    %244 = vmatpush.msra.mxu0 %v120
    %245 = vmatpush.msra.mxu0 %v119
    %246 = vmatpush.msra.mxu0 %v118
    %247 = vmatpush.msra.mxu0 %v117
    %248 = vmatpush.msra.mxu0 %v116
    %249 = vmatpush.msra.mxu0 %v115
    %250 = vmatpush.msra.mxu0 %v114
    %251 = vmatpush.msra.mxu0 %v113
    %252 = vmatpush.msra.mxu0 %v112
    %253 = vmatpush.msra.mxu0 %v111
    %254 = vmatpush.msra.mxu0 %v110
    %255 = vmatpush.msra.mxu0 %v109
    %256 = vmatpush.msra.mxu0 %v108
    %257 = vmatmul.f32.gmra.mxu0 %v153
    %v258 = vpop.f32.mrf.mxu0
    %v259 = vadd.f32 %v239, %v258
    %260 = vdwg.mxu0
    %261 = vmatpush.msra.mxu0 %v139
    %262 = vmatpush.msra.mxu0 %v138
    %263 = vmatpush.msra.mxu0 %v137
    %264 = vmatpush.msra.mxu0 %v136
    %265 = vmatpush.msra.mxu0 %v135
    %266 = vmatpush.msra.mxu0 %v134
    %267 = vmatpush.msra.mxu0 %v133
    %268 = vmatpush.msra.mxu0 %v132
    %269 = vmatpush.msra.mxu0 %v131
    %270 = vmatpush.msra.mxu0 %v130
    %271 = vmatpush.msra.mxu0 %v129
    %272 = vmatpush.msra.mxu0 %v128
    %273 = vmatpush.msra.mxu0 %v127
    %274 = vmatpush.msra.mxu0 %v126
    %275 = vmatpush.msra.mxu0 %v125
    %276 = vmatpush.msra.mxu0 %v124
    %277 = vmatmul.f32.gmra.mxu0 %v154
    %v278 = vpop.f32.mrf.mxu0
    %v279 = vadd.f32 %v259, %v278
    %280 = vdwg.mxu0
    %vm281 = vcmask 254976
    %282 = vst.msk [vmem:[#allocation2] sm:$0x3] %vm281, %v279
    %v283 = vld [vmem:[%s3] sm:$0xff]
    %v284 = vld [vmem:[%s3 + $0x8] sm:$0xff]
    %v285 = vld [vmem:[%s4] sm:$0xff]
    %v286 = vld [vmem:[%s4 + $0x8] sm:$0xff]
    %v287 = vld [vmem:[%s5] sm:$0x1]
    %v289 = vperm.slane %v287, 0
    %vm291 = vcmask 130048
    %v293 = vsel %vm291, %v283, 0
    %v296 = vsel %vm291, %v284, 0
    %298 = vmatpush.msra.mxu0 0.0
    %299 = vmatpush.msra.mxu0 0.0
    %300 = vmatpush.msra.mxu0 0.0
    %301 = vmatpush.msra.mxu0 0.0
    %302 = vmatpush.msra.mxu0 0.0
    %303 = vmatpush.msra.mxu0 0.0
    %304 = vmatpush.msra.mxu0 0.0
    %305 = vmatpush.msra.mxu0 0.0
    %306 = vmatpush.msra.mxu0 0.0
    %307 = vmatpush.msra.mxu0 0.0
    %308 = vmatpush.msra.mxu0 0.0
    %309 = vmatpush.msra.mxu0 0.0
    %310 = vmatpush.msra.mxu0 0.0
    %311 = vmatpush.msra.mxu0 0.0
    %312 = vmatpush.msra.mxu0 %v286
    %313 = vmatpush.msra.mxu0 %v285
    %314 = vmatmul.f32.gmra.mxu0 %v293
    %v315 = vpop.f32.mrf.mxu0
    %v316 = vadd.f32 %v289, %v315
    %317 = vmatmul.f32.gmra.mxu0 %v296
    %v318 = vpop.f32.mrf.mxu0
    %v319 = vadd.f32 %v289, %v318
    %320 = vdwg.mxu0
    %v321 = vld [vmem:[%s6] sm:$0xff]
    %v322 = vld [vmem:[%s6 + $0x8] sm:$0xff]
    %v323 = vld [vmem:[%s6 + $0x10] sm:$0xff]
    %v324 = vld [vmem:[%s6 + $0x18] sm:$0xff]
    %v325 = vld [vmem:[%s6 + $0x20] sm:$0xff]
    %v326 = vld [vmem:[%s6 + $0x28] sm:$0xff]
    %v327 = vld [vmem:[%s6 + $0x30] sm:$0xff]
    %v328 = vld [vmem:[%s6 + $0x38] sm:$0xff]
    %v329 = vld [vmem:[%s7] sm:$0x1]
    %v330 = vld [vmem:[%s8] sm:$0xff]
    %v331 = vld [vmem:[%s8 + $0x8] sm:$0xff]
    %v332 = vld [vmem:[%s8 + $0x10] sm:$0xff]
    %v333 = vld [vmem:[%s8 + $0x18] sm:$0xff]
    %v334 = vadd.f32 %v316, 0.0
    %v335 = vxor.u32 %v334, 2147483648
    %v336 = vmul.f32 %v335, 1.442695
    %v337 = vpow.pop %v336
    %v338 = vadd.f32 %v337, 1.0
    %v339 = vrcp.pop %v338
    %v340 = vmul.f32 %v338, %v339
    %v341 = vsub.f32 1.0, %v340
    %v342 = vmul.f32 %v339, %v341
    %v343 = vadd.f32 %v339, %v342
    %vm344 = vweird.f32 %v338
    %vm345 = vweird.f32 %v339
    %vm346 = vmor %vm344, %vm345
    %v347 = vsel %vm346, %v339, %v343
    %v348 = vand.u32 2147483647, %v338
    %vm349 = vcmp.eq.f32.partialorder %v348, 8.507059e+37
    %v350 = vand.u32 %v338, 2147483648
    %v351 = vor.u32 1.1754944e-38, %v350
    %v352 = vsel %vm349, %v351, %v347
    %v353 = vmul.f32 1.0, %v352
    %v354 = vmul.f32 %v353, 2.0
    %v355 = vsub.f32 %v354, 1.0
    %v356 = vmul.f32 %v353, 0.0
    %358 = vrot.lane.b32.xlu0 %v355, 64
    %v359 = vpop.permute.xlu0 %358
    %v361 = vmul.f32 %v353, %v359
    %363 = vrot.lane.b32.xlu0 %v361, 32
    %v364 = vpop.permute.xlu0 %363
    %v366 = vadd.f32 %v356, %v364
    %v367 = vtanh.pop %v366
    %369 = vrot.lane.b32.xlu0 %v367, 64
    %v370 = vpop.permute.xlu0 %369
    %v372 = vmul.f32 %v353, %v370
    %374 = vrot.lane.b32.xlu0 %v372, 32
    %v375 = vpop.permute.xlu0 %374
    %vm376 = vcmask 261120
    %v377 = vsel %vm376, %v375, 0
    %379 = vmatpush.msra.mxu0 0.0
    %380 = vmatpush.msra.mxu0 0.0
    %381 = vmatpush.msra.mxu0 0.0
    %382 = vmatpush.msra.mxu0 0.0
    %383 = vmatpush.msra.mxu0 0.0
    %384 = vmatpush.msra.mxu0 0.0
    %385 = vmatpush.msra.mxu0 0.0
    %386 = vmatpush.msra.mxu0 0.0
    %387 = vmatpush.msra.mxu0 0.0
    %388 = vmatpush.msra.mxu0 0.0
    %389 = vmatpush.msra.mxu0 0.0
    %390 = vmatpush.msra.mxu0 0.0
    %391 = vmatpush.msra.mxu0 %v327
    %392 = vmatpush.msra.mxu0 %v325
    %393 = vmatpush.msra.mxu0 %v323
    %394 = vmatpush.msra.mxu0 %v321
    %395 = vmatmul.f32.gmra.mxu0 %v377
    %v396 = vpop.f32.mrf.mxu0
    %v397 = vadd.f32 0.0, %v396
    %398 = vdwg.mxu0
    %399 = vmatpush.msra.mxu0 0.0
    %400 = vmatpush.msra.mxu0 0.0
    %401 = vmatpush.msra.mxu0 0.0
    %402 = vmatpush.msra.mxu0 0.0
    %403 = vmatpush.msra.mxu0 0.0
    %404 = vmatpush.msra.mxu0 0.0
    %405 = vmatpush.msra.mxu0 0.0
    %406 = vmatpush.msra.mxu0 0.0
    %407 = vmatpush.msra.mxu0 0.0
    %408 = vmatpush.msra.mxu0 0.0
    %409 = vmatpush.msra.mxu0 0.0
    %410 = vmatpush.msra.mxu0 0.0
    %411 = vmatpush.msra.mxu0 %v328
    %412 = vmatpush.msra.mxu0 %v326
    %413 = vmatpush.msra.mxu0 %v324
    %414 = vmatpush.msra.mxu0 %v322
    %415 = vmatmul.f32.gmra.mxu0 %v377
    %v416 = vpop.f32.mrf.mxu0
    %v417 = vadd.f32 0.0, %v416
    %418 = vdwg.mxu0
    %v419 = vadd.f32 %v417, 0.0
    %v421 = vperm.slane %v329, 0
    %v423 = vadd.f32 %v419, %v421
    %v424 = vxor.u32 %v423, 2147483648
    %v425 = vmul.f32 %v424, 1.442695
    %v426 = vpow.pop %v425
    %v427 = vadd.f32 %v426, 1.0
    %v428 = vrcp.pop %v427
    %v429 = vmul.f32 %v427, %v428
    %v430 = vsub.f32 1.0, %v429
    %v431 = vmul.f32 %v428, %v430
    %v432 = vadd.f32 %v428, %v431
    %vm433 = vweird.f32 %v427
    %vm434 = vweird.f32 %v428
    %vm435 = vmor %vm433, %vm434
    %v436 = vsel %vm435, %v428, %v432
    %v437 = vand.u32 2147483647, %v427
    %vm438 = vcmp.eq.f32.partialorder %v437, 8.507059e+37
    %v439 = vand.u32 %v427, 2147483648
    %v440 = vor.u32 1.1754944e-38, %v439
    %v441 = vsel %vm438, %v440, %v436
    %v442 = vmul.f32 1.0, %v441
    %v443 = vmul.f32 %v442, 2.0
    %v444 = vsub.f32 %v443, 1.0
    %v445 = vmul.f32 %v442, 0.0
    %447 = vrot.lane.b32.xlu0 %v444, 64
    %v448 = vpop.permute.xlu0 %447
    %v450 = vmul.f32 %v442, %v448
    %452 = vrot.lane.b32.xlu0 %v450, 32
    %v453 = vpop.permute.xlu0 %452
    %v455 = vadd.f32 %v445, %v453
    %v456 = vtanh.pop %v455
    %458 = vrot.lane.b32.xlu0 %v456, 64
    %v459 = vpop.permute.xlu0 %458
    %v461 = vmul.f32 %v442, %v459
    %463 = vrot.lane.b32.xlu0 %v461, 32
    %v464 = vpop.permute.xlu0 %463
    %v465 = vsel %vm376, %v464, 0
    %467 = vmatpush.msra.mxu0 0.0
    %468 = vmatpush.msra.mxu0 0.0
    %469 = vmatpush.msra.mxu0 0.0
    %470 = vmatpush.msra.mxu0 0.0
    %471 = vmatpush.msra.mxu0 0.0
    %472 = vmatpush.msra.mxu0 0.0
    %473 = vmatpush.msra.mxu0 0.0
    %474 = vmatpush.msra.mxu0 0.0
    %475 = vmatpush.msra.mxu0 0.0
    %476 = vmatpush.msra.mxu0 0.0
    %477 = vmatpush.msra.mxu0 0.0
    %478 = vmatpush.msra.mxu0 0.0
    %479 = vmatpush.msra.mxu0 %v333
    %480 = vmatpush.msra.mxu0 %v332
    %481 = vmatpush.msra.mxu0 %v331
    %482 = vmatpush.msra.mxu0 %v330
    %483 = vmatmul.f32.gmra.mxu0 %v465
    %v484 = vpop.f32.mrf.mxu0
    %v485 = vadd.f32 0.0, %v484
    %486 = vdwg.mxu0
    %v488 = vrot.slane %v397, 6
    %v490 = vadd.f32 %v316, %v488
    %v491 = vxor.u32 %v490, 2147483648
    %v492 = vmul.f32 %v491, 1.442695
    %v493 = vpow.pop %v492
    %v494 = vadd.f32 %v493, 1.0
    %v495 = vrcp.pop %v494
    %v496 = vmul.f32 %v494, %v495
    %v497 = vsub.f32 1.0, %v496
    %v498 = vmul.f32 %v495, %v497
    %v499 = vadd.f32 %v495, %v498
    %vm500 = vweird.f32 %v494
    %vm501 = vweird.f32 %v495
    %vm502 = vmor %vm500, %vm501
    %v503 = vsel %vm502, %v495, %v499
    %v504 = vand.u32 2147483647, %v494
    %vm505 = vcmp.eq.f32.partialorder %v504, 8.507059e+37
    %v506 = vand.u32 %v494, 2147483648
    %v507 = vor.u32 1.1754944e-38, %v506
    %v508 = vsel %vm505, %v507, %v503
    %v509 = vmul.f32 1.0, %v508
    %v510 = vmul.f32 %v509, 2.0
    %v511 = vsub.f32 %v510, 1.0
    %v513 = vrot.slane %v366, 6
    %v515 = vmul.f32 %v509, %v513
    %517 = vrot.lane.b32.xlu0 %v511, 64
    %v518 = vpop.permute.xlu0 %517
    %v520 = vmul.f32 %v509, %v518
    %522 = vrot.lane.b32.xlu0 %v520, 32
    %v523 = vpop.permute.xlu0 %522
    %v525 = vadd.f32 %v515, %v523
    %v526 = vtanh.pop %v525
    %528 = vrot.lane.b32.xlu0 %v526, 64
    %v529 = vpop.permute.xlu0 %528
    %v531 = vmul.f32 %v509, %v529
    %v533 = vrot.slane %v531, 2
    %534 = vrot.lane.b32.xlu0 %v533, 32
    %v535 = vpop.permute.xlu0 %534
    %v536 = vsel %vm376, %v535, 0
    %538 = vmatpush.msra.mxu0 0.0
    %539 = vmatpush.msra.mxu0 0.0
    %540 = vmatpush.msra.mxu0 0.0
    %541 = vmatpush.msra.mxu0 0.0
    %542 = vmatpush.msra.mxu0 0.0
    %543 = vmatpush.msra.mxu0 0.0
    %544 = vmatpush.msra.mxu0 0.0
    %545 = vmatpush.msra.mxu0 0.0
    %546 = vmatpush.msra.mxu0 0.0
    %547 = vmatpush.msra.mxu0 0.0
    %548 = vmatpush.msra.mxu0 0.0
    %549 = vmatpush.msra.mxu0 0.0
    %550 = vmatpush.msra.mxu0 %v327
    %551 = vmatpush.msra.mxu0 %v325
    %552 = vmatpush.msra.mxu0 %v323
    %553 = vmatpush.msra.mxu0 %v321
    %554 = vmatmul.f32.gmra.mxu0 %v536
    %v555 = vpop.f32.mrf.mxu0
    %v556 = vadd.f32 0.0, %v555
    %557 = vdwg.mxu0
    %558 = vmatpush.msra.mxu0 0.0
    %559 = vmatpush.msra.mxu0 0.0
    %560 = vmatpush.msra.mxu0 0.0
    %561 = vmatpush.msra.mxu0 0.0
    %562 = vmatpush.msra.mxu0 0.0
    %563 = vmatpush.msra.mxu0 0.0
    %564 = vmatpush.msra.mxu0 0.0
    %565 = vmatpush.msra.mxu0 0.0
    %566 = vmatpush.msra.mxu0 0.0
    %567 = vmatpush.msra.mxu0 0.0
    %568 = vmatpush.msra.mxu0 0.0
    %569 = vmatpush.msra.mxu0 0.0
    %570 = vmatpush.msra.mxu0 %v328
    %571 = vmatpush.msra.mxu0 %v326
    %572 = vmatpush.msra.mxu0 %v324
    %573 = vmatpush.msra.mxu0 %v322
    %574 = vmatmul.f32.gmra.mxu0 %v536
    %v575 = vpop.f32.mrf.mxu0
    %v576 = vadd.f32 0.0, %v575
    %577 = vdwg.mxu0
    %v578 = vadd.f32 %v576, %v485
    %v579 = vadd.f32 %v578, %v421
    %v580 = vxor.u32 %v579, 2147483648
    %v581 = vmul.f32 %v580, 1.442695
    %v582 = vpow.pop %v581
    %v583 = vadd.f32 %v582, 1.0
    %v584 = vrcp.pop %v583
    %v585 = vmul.f32 %v583, %v584
    %v586 = vsub.f32 1.0, %v585
    %v587 = vmul.f32 %v584, %v586
    %v588 = vadd.f32 %v584, %v587
    %vm589 = vweird.f32 %v583
    %vm590 = vweird.f32 %v584
    %vm591 = vmor %vm589, %vm590
    %v592 = vsel %vm591, %v584, %v588
    %v593 = vand.u32 2147483647, %v583
    %vm594 = vcmp.eq.f32.partialorder %v593, 8.507059e+37
    %v595 = vand.u32 %v583, 2147483648
    %v596 = vor.u32 1.1754944e-38, %v595
    %v597 = vsel %vm594, %v596, %v592
    %v598 = vmul.f32 1.0, %v597
    %v599 = vmul.f32 %v598, 2.0
    %v600 = vsub.f32 %v599, 1.0
    %v601 = vmul.f32 %v598, %v455
    %603 = vrot.lane.b32.xlu0 %v600, 64
    %v604 = vpop.permute.xlu0 %603
    %v606 = vmul.f32 %v598, %v604
    %608 = vrot.lane.b32.xlu0 %v606, 32
    %v609 = vpop.permute.xlu0 %608
    %v611 = vadd.f32 %v601, %v609
    %v612 = vtanh.pop %v611
    %614 = vrot.lane.b32.xlu0 %v612, 64
    %v615 = vpop.permute.xlu0 %614
    %v617 = vmul.f32 %v598, %v615
    %619 = vrot.lane.b32.xlu0 %v617, 32
    %v620 = vpop.permute.xlu0 %619
    %v621 = vsel %vm376, %v620, 0
    %623 = vmatpush.msra.mxu0 0.0
    %624 = vmatpush.msra.mxu0 0.0
    %625 = vmatpush.msra.mxu0 0.0
    %626 = vmatpush.msra.mxu0 0.0
    %627 = vmatpush.msra.mxu0 0.0
    %628 = vmatpush.msra.mxu0 0.0
    %629 = vmatpush.msra.mxu0 0.0
    %630 = vmatpush.msra.mxu0 0.0
    %631 = vmatpush.msra.mxu0 0.0
    %632 = vmatpush.msra.mxu0 0.0
    %633 = vmatpush.msra.mxu0 0.0
    %634 = vmatpush.msra.mxu0 0.0
    %635 = vmatpush.msra.mxu0 %v333
    %636 = vmatpush.msra.mxu0 %v332
    %637 = vmatpush.msra.mxu0 %v331
    %638 = vmatpush.msra.mxu0 %v330
    %639 = vmatmul.f32.gmra.mxu0 %v621
    %v640 = vpop.f32.mrf.mxu0
    %v641 = vadd.f32 0.0, %v640
    %642 = vdwg.mxu0
    %v644 = vrot.slane %v556, 4
    %v646 = vadd.f32 %v316, %v644
    %v647 = vxor.u32 %v646, 2147483648
    %v648 = vmul.f32 %v647, 1.442695
    %v649 = vpow.pop %v648
    %v650 = vadd.f32 %v649, 1.0
    %v651 = vrcp.pop %v650
    %v652 = vmul.f32 %v650, %v651
    %v653 = vsub.f32 1.0, %v652
    %v654 = vmul.f32 %v651, %v653
    %v655 = vadd.f32 %v651, %v654
    %vm656 = vweird.f32 %v650
    %vm657 = vweird.f32 %v651
    %vm658 = vmor %vm656, %vm657
    %v659 = vsel %vm658, %v651, %v655
    %v660 = vand.u32 2147483647, %v650
    %vm661 = vcmp.eq.f32.partialorder %v660, 8.507059e+37
    %v662 = vand.u32 %v650, 2147483648
    %v663 = vor.u32 1.1754944e-38, %v662
    %v664 = vsel %vm661, %v663, %v659
    %v665 = vmul.f32 1.0, %v664
    %v666 = vmul.f32 %v665, 2.0
    %v667 = vsub.f32 %v666, 1.0
    %v669 = vrot.slane %v525, 6
    %v671 = vmul.f32 %v665, %v669
    %673 = vrot.lane.b32.xlu0 %v667, 64
    %v674 = vpop.permute.xlu0 %673
    %v676 = vmul.f32 %v665, %v674
    %678 = vrot.lane.b32.xlu0 %v676, 32
    %v679 = vpop.permute.xlu0 %678
    %v681 = vadd.f32 %v671, %v679
    %v682 = vtanh.pop %v681
    %684 = vrot.lane.b32.xlu0 %v682, 64
    %v685 = vpop.permute.xlu0 %684
    %v687 = vmul.f32 %v665, %v685
    %v689 = vrot.slane %v687, 4
    %690 = vrot.lane.b32.xlu0 %v689, 32
    %v691 = vpop.permute.xlu0 %690
    %v692 = vsel %vm376, %v691, 0
    %694 = vmatpush.msra.mxu0 0.0
    %695 = vmatpush.msra.mxu0 0.0
    %696 = vmatpush.msra.mxu0 0.0
    %697 = vmatpush.msra.mxu0 0.0
    %698 = vmatpush.msra.mxu0 0.0
    %699 = vmatpush.msra.mxu0 0.0
    %700 = vmatpush.msra.mxu0 0.0
    %701 = vmatpush.msra.mxu0 0.0
    %702 = vmatpush.msra.mxu0 0.0
    %703 = vmatpush.msra.mxu0 0.0
    %704 = vmatpush.msra.mxu0 0.0
    %705 = vmatpush.msra.mxu0 0.0
    %706 = vmatpush.msra.mxu0 %v327
    %707 = vmatpush.msra.mxu0 %v325
    %708 = vmatpush.msra.mxu0 %v323
    %709 = vmatpush.msra.mxu0 %v321
    %710 = vmatmul.f32.gmra.mxu0 %v692
    %v711 = vpop.f32.mrf.mxu0
    %v712 = vadd.f32 0.0, %v711
    %713 = vdwg.mxu0
    %714 = vmatpush.msra.mxu0 0.0
    %715 = vmatpush.msra.mxu0 0.0
    %716 = vmatpush.msra.mxu0 0.0
    %717 = vmatpush.msra.mxu0 0.0
    %718 = vmatpush.msra.mxu0 0.0
    %719 = vmatpush.msra.mxu0 0.0
    %720 = vmatpush.msra.mxu0 0.0
    %721 = vmatpush.msra.mxu0 0.0
    %722 = vmatpush.msra.mxu0 0.0
    %723 = vmatpush.msra.mxu0 0.0
    %724 = vmatpush.msra.mxu0 0.0
    %725 = vmatpush.msra.mxu0 0.0
    %726 = vmatpush.msra.mxu0 %v328
    %727 = vmatpush.msra.mxu0 %v326
    %728 = vmatpush.msra.mxu0 %v324
    %729 = vmatpush.msra.mxu0 %v322
    %730 = vmatmul.f32.gmra.mxu0 %v692
    %v731 = vpop.f32.mrf.mxu0
    %v732 = vadd.f32 0.0, %v731
    %733 = vdwg.mxu0
    %v734 = vadd.f32 %v732, %v641
    %v735 = vadd.f32 %v734, %v421
    %v736 = vxor.u32 %v735, 2147483648
    %v737 = vmul.f32 %v736, 1.442695
    %v738 = vpow.pop %v737
    %v739 = vadd.f32 %v738, 1.0
    %v740 = vrcp.pop %v739
    %v741 = vmul.f32 %v739, %v740
    %v742 = vsub.f32 1.0, %v741
    %v743 = vmul.f32 %v740, %v742
    %v744 = vadd.f32 %v740, %v743
    %vm745 = vweird.f32 %v739
    %vm746 = vweird.f32 %v740
    %vm747 = vmor %vm745, %vm746
    %v748 = vsel %vm747, %v740, %v744
    %v749 = vand.u32 2147483647, %v739
    %vm750 = vcmp.eq.f32.partialorder %v749, 8.507059e+37
    %v751 = vand.u32 %v739, 2147483648
    %v752 = vor.u32 1.1754944e-38, %v751
    %v753 = vsel %vm750, %v752, %v748
    %v754 = vmul.f32 1.0, %v753
    %v755 = vmul.f32 %v754, 2.0
    %v756 = vsub.f32 %v755, 1.0
    %v757 = vmul.f32 %v754, %v611
    %759 = vrot.lane.b32.xlu0 %v756, 64
    %v760 = vpop.permute.xlu0 %759
    %v762 = vmul.f32 %v754, %v760
    %764 = vrot.lane.b32.xlu0 %v762, 32
    %v765 = vpop.permute.xlu0 %764
    %v767 = vadd.f32 %v757, %v765
    %v768 = vtanh.pop %v767
    %770 = vrot.lane.b32.xlu0 %v768, 64
    %v771 = vpop.permute.xlu0 %770
    %v773 = vmul.f32 %v754, %v771
    %775 = vrot.lane.b32.xlu0 %v773, 32
    %v776 = vpop.permute.xlu0 %775
    %v777 = vsel %vm376, %v776, 0
    %779 = vmatpush.msra.mxu0 0.0
    %780 = vmatpush.msra.mxu0 0.0
    %781 = vmatpush.msra.mxu0 0.0
    %782 = vmatpush.msra.mxu0 0.0
    %783 = vmatpush.msra.mxu0 0.0
    %784 = vmatpush.msra.mxu0 0.0
    %785 = vmatpush.msra.mxu0 0.0
    %786 = vmatpush.msra.mxu0 0.0
    %787 = vmatpush.msra.mxu0 0.0
    %788 = vmatpush.msra.mxu0 0.0
    %789 = vmatpush.msra.mxu0 0.0
    %790 = vmatpush.msra.mxu0 0.0
    %791 = vmatpush.msra.mxu0 %v333
    %792 = vmatpush.msra.mxu0 %v332
    %793 = vmatpush.msra.mxu0 %v331
    %794 = vmatpush.msra.mxu0 %v330
    %795 = vmatmul.f32.gmra.mxu0 %v777
    %v796 = vpop.f32.mrf.mxu0
    %v797 = vadd.f32 0.0, %v796
    %798 = vdwg.mxu0
    %v800 = vrot.slane %v712, 2
    %v802 = vadd.f32 %v316, %v800
    %v803 = vxor.u32 %v802, 2147483648
    %v804 = vmul.f32 %v803, 1.442695
    %v805 = vpow.pop %v804
    %v806 = vadd.f32 %v805, 1.0
    %v807 = vrcp.pop %v806
    %v808 = vmul.f32 %v806, %v807
    %v809 = vsub.f32 1.0, %v808
    %v810 = vmul.f32 %v807, %v809
    %v811 = vadd.f32 %v807, %v810
    %vm812 = vweird.f32 %v806
    %vm813 = vweird.f32 %v807
    %vm814 = vmor %vm812, %vm813
    %v815 = vsel %vm814, %v807, %v811
    %v816 = vand.u32 2147483647, %v806
    %vm817 = vcmp.eq.f32.partialorder %v816, 8.507059e+37
    %v818 = vand.u32 %v806, 2147483648
    %v819 = vor.u32 1.1754944e-38, %v818
    %v820 = vsel %vm817, %v819, %v815
    %v821 = vmul.f32 1.0, %v820
    %v822 = vmul.f32 %v821, 2.0
    %v823 = vsub.f32 %v822, 1.0
    %v825 = vrot.slane %v681, 6
    %v827 = vmul.f32 %v821, %v825
    %829 = vrot.lane.b32.xlu0 %v823, 64
    %v830 = vpop.permute.xlu0 %829
    %v832 = vmul.f32 %v821, %v830
    %834 = vrot.lane.b32.xlu0 %v832, 32
    %v835 = vpop.permute.xlu0 %834
    %v837 = vadd.f32 %v827, %v835
    %v838 = vtanh.pop %v837
    %840 = vrot.lane.b32.xlu0 %v838, 64
    %v841 = vpop.permute.xlu0 %840
    %v843 = vmul.f32 %v821, %v841
    %v845 = vrot.slane %v843, 6
    %846 = vrot.lane.b32.xlu0 %v845, 32
    %v847 = vpop.permute.xlu0 %846
    %v848 = vsel %vm376, %v847, 0
    %850 = vmatpush.msra.mxu0 0.0
    %851 = vmatpush.msra.mxu0 0.0
    %852 = vmatpush.msra.mxu0 0.0
    %853 = vmatpush.msra.mxu0 0.0
    %854 = vmatpush.msra.mxu0 0.0
    %855 = vmatpush.msra.mxu0 0.0
    %856 = vmatpush.msra.mxu0 0.0
    %857 = vmatpush.msra.mxu0 0.0
    %858 = vmatpush.msra.mxu0 0.0
    %859 = vmatpush.msra.mxu0 0.0
    %860 = vmatpush.msra.mxu0 0.0
    %861 = vmatpush.msra.mxu0 0.0
    %862 = vmatpush.msra.mxu0 %v327
    %863 = vmatpush.msra.mxu0 %v325
    %864 = vmatpush.msra.mxu0 %v323
    %865 = vmatpush.msra.mxu0 %v321
    %866 = vmatmul.f32.gmra.mxu0 %v848
    %v867 = vpop.f32.mrf.mxu0
    %v868 = vadd.f32 0.0, %v867
    %869 = vdwg.mxu0
    %870 = vmatpush.msra.mxu0 0.0
    %871 = vmatpush.msra.mxu0 0.0
    %872 = vmatpush.msra.mxu0 0.0
    %873 = vmatpush.msra.mxu0 0.0
    %874 = vmatpush.msra.mxu0 0.0
    %875 = vmatpush.msra.mxu0 0.0
    %876 = vmatpush.msra.mxu0 0.0
    %877 = vmatpush.msra.mxu0 0.0
    %878 = vmatpush.msra.mxu0 0.0
    %879 = vmatpush.msra.mxu0 0.0
    %880 = vmatpush.msra.mxu0 0.0
    %881 = vmatpush.msra.mxu0 0.0
    %882 = vmatpush.msra.mxu0 %v328
    %883 = vmatpush.msra.mxu0 %v326
    %884 = vmatpush.msra.mxu0 %v324
    %885 = vmatpush.msra.mxu0 %v322
    %886 = vmatmul.f32.gmra.mxu0 %v848
    %v887 = vpop.f32.mrf.mxu0
    %v888 = vadd.f32 0.0, %v887
    %889 = vdwg.mxu0
    %v890 = vadd.f32 %v888, %v797
    %v891 = vadd.f32 %v890, %v421
    %v892 = vxor.u32 %v891, 2147483648
    %v893 = vmul.f32 %v892, 1.442695
    %v894 = vpow.pop %v893
    %v895 = vadd.f32 %v894, 1.0
    %v896 = vrcp.pop %v895
    %v897 = vmul.f32 %v895, %v896
    %v898 = vsub.f32 1.0, %v897
    %v899 = vmul.f32 %v896, %v898
    %v900 = vadd.f32 %v896, %v899
    %vm901 = vweird.f32 %v895
    %vm902 = vweird.f32 %v896
    %vm903 = vmor %vm901, %vm902
    %v904 = vsel %vm903, %v896, %v900
    %v905 = vand.u32 2147483647, %v895
    %vm906 = vcmp.eq.f32.partialorder %v905, 8.507059e+37
    %v907 = vand.u32 %v895, 2147483648
    %v908 = vor.u32 1.1754944e-38, %v907
    %v909 = vsel %vm906, %v908, %v904
    %v910 = vmul.f32 1.0, %v909
    %v911 = vmul.f32 %v910, 2.0
    %v912 = vsub.f32 %v911, 1.0
    %v913 = vmul.f32 %v910, %v767
    %915 = vrot.lane.b32.xlu0 %v912, 64
    %v916 = vpop.permute.xlu0 %915
    %v918 = vmul.f32 %v910, %v916
    %920 = vrot.lane.b32.xlu0 %v918, 32
    %v921 = vpop.permute.xlu0 %920
    %v923 = vadd.f32 %v913, %v921
    %v924 = vtanh.pop %v923
    %926 = vrot.lane.b32.xlu0 %v924, 64
    %v927 = vpop.permute.xlu0 %926
    %v929 = vmul.f32 %v910, %v927
    %931 = vrot.lane.b32.xlu0 %v929, 32
    %v932 = vpop.permute.xlu0 %931
    %v933 = vsel %vm376, %v932, 0
    %935 = vmatpush.msra.mxu0 0.0
    %936 = vmatpush.msra.mxu0 0.0
    %937 = vmatpush.msra.mxu0 0.0
    %938 = vmatpush.msra.mxu0 0.0
    %939 = vmatpush.msra.mxu0 0.0
    %940 = vmatpush.msra.mxu0 0.0
    %941 = vmatpush.msra.mxu0 0.0
    %942 = vmatpush.msra.mxu0 0.0
    %943 = vmatpush.msra.mxu0 0.0
    %944 = vmatpush.msra.mxu0 0.0
    %945 = vmatpush.msra.mxu0 0.0
    %946 = vmatpush.msra.mxu0 0.0
    %947 = vmatpush.msra.mxu0 %v333
    %948 = vmatpush.msra.mxu0 %v332
    %949 = vmatpush.msra.mxu0 %v331
    %950 = vmatpush.msra.mxu0 %v330
    %951 = vmatmul.f32.gmra.mxu0 %v933
    %v952 = vpop.f32.mrf.mxu0
    %v953 = vadd.f32 0.0, %v952
    %954 = vdwg.mxu0
    %v955 = vadd.f32 %v319, %v868
    %v956 = vxor.u32 %v955, 2147483648
    %v957 = vmul.f32 %v956, 1.442695
    %v958 = vpow.pop %v957
    %v959 = vadd.f32 %v958, 1.0
    %v960 = vrcp.pop %v959
    %v961 = vmul.f32 %v959, %v960
    %v962 = vsub.f32 1.0, %v961
    %v963 = vmul.f32 %v960, %v962
    %v964 = vadd.f32 %v960, %v963
    %vm965 = vweird.f32 %v959
    %vm966 = vweird.f32 %v960
    %vm967 = vmor %vm965, %vm966
    %v968 = vsel %vm967, %v960, %v964
    %v969 = vand.u32 2147483647, %v959
    %vm970 = vcmp.eq.f32.partialorder %v969, 8.507059e+37
    %v971 = vand.u32 %v959, 2147483648
    %v972 = vor.u32 1.1754944e-38, %v971
    %v973 = vsel %vm970, %v972, %v968
    %v974 = vmul.f32 1.0, %v973
    %v975 = vmul.f32 %v974, 2.0
    %v976 = vsub.f32 %v975, 1.0
    %v978 = vrot.slane %v837, 6
    %v980 = vmul.f32 %v974, %v978
    %982 = vrot.lane.b32.xlu0 %v976, 64
    %v983 = vpop.permute.xlu0 %982
    %v985 = vmul.f32 %v974, %v983
    %987 = vrot.lane.b32.xlu0 %v985, 32
    %v988 = vpop.permute.xlu0 %987
    %v990 = vadd.f32 %v980, %v988
    %v991 = vtanh.pop %v990
    %993 = vrot.lane.b32.xlu0 %v991, 64
    %v994 = vpop.permute.xlu0 %993
    %v996 = vmul.f32 %v974, %v994
    %998 = vrot.lane.b32.xlu0 %v996, 32
    %v999 = vpop.permute.xlu0 %998
    %v1000 = vsel %vm376, %v999, 0
    %1002 = vmatpush.msra.mxu0 0.0
    %1003 = vmatpush.msra.mxu0 0.0
    %1004 = vmatpush.msra.mxu0 0.0
    %1005 = vmatpush.msra.mxu0 0.0
    %1006 = vmatpush.msra.mxu0 0.0
    %1007 = vmatpush.msra.mxu0 0.0
    %1008 = vmatpush.msra.mxu0 0.0
    %1009 = vmatpush.msra.mxu0 0.0
    %1010 = vmatpush.msra.mxu0 0.0
    %1011 = vmatpush.msra.mxu0 0.0
    %1012 = vmatpush.msra.mxu0 0.0
    %1013 = vmatpush.msra.mxu0 0.0
    %1014 = vmatpush.msra.mxu0 %v327
    %1015 = vmatpush.msra.mxu0 %v325
    %1016 = vmatpush.msra.mxu0 %v323
    %1017 = vmatpush.msra.mxu0 %v321
    %1018 = vmatmul.f32.gmra.mxu0 %v1000
    %v1019 = vpop.f32.mrf.mxu0
    %v1020 = vadd.f32 0.0, %v1019
    %1021 = vdwg.mxu0
    %1022 = vmatpush.msra.mxu0 0.0
    %1023 = vmatpush.msra.mxu0 0.0
    %1024 = vmatpush.msra.mxu0 0.0
    %1025 = vmatpush.msra.mxu0 0.0
    %1026 = vmatpush.msra.mxu0 0.0
    %1027 = vmatpush.msra.mxu0 0.0
    %1028 = vmatpush.msra.mxu0 0.0
    %1029 = vmatpush.msra.mxu0 0.0
    %1030 = vmatpush.msra.mxu0 0.0
    %1031 = vmatpush.msra.mxu0 0.0
    %1032 = vmatpush.msra.mxu0 0.0
    %1033 = vmatpush.msra.mxu0 0.0
    %1034 = vmatpush.msra.mxu0 %v328
    %1035 = vmatpush.msra.mxu0 %v326
    %1036 = vmatpush.msra.mxu0 %v324
    %1037 = vmatpush.msra.mxu0 %v322
    %1038 = vmatmul.f32.gmra.mxu0 %v1000
    %v1039 = vpop.f32.mrf.mxu0
    %v1040 = vadd.f32 0.0, %v1039
    %1041 = vdwg.mxu0
    %v1042 = vadd.f32 %v1040, %v953
    %v1043 = vadd.f32 %v1042, %v421
    %v1044 = vxor.u32 %v1043, 2147483648
    %v1045 = vmul.f32 %v1044, 1.442695
    %v1046 = vpow.pop %v1045
    %v1047 = vadd.f32 %v1046, 1.0
    %v1048 = vrcp.pop %v1047
    %v1049 = vmul.f32 %v1047, %v1048
    %v1050 = vsub.f32 1.0, %v1049
    %v1051 = vmul.f32 %v1048, %v1050
    %v1052 = vadd.f32 %v1048, %v1051
    %vm1053 = vweird.f32 %v1047
    %vm1054 = vweird.f32 %v1048
    %vm1055 = vmor %vm1053, %vm1054
    %v1056 = vsel %vm1055, %v1048, %v1052
    %v1057 = vand.u32 2147483647, %v1047
    %vm1058 = vcmp.eq.f32.partialorder %v1057, 8.507059e+37
    %v1059 = vand.u32 %v1047, 2147483648
    %v1060 = vor.u32 1.1754944e-38, %v1059
    %v1061 = vsel %vm1058, %v1060, %v1056
    %v1062 = vmul.f32 1.0, %v1061
    %v1063 = vmul.f32 %v1062, 2.0
    %v1064 = vsub.f32 %v1063, 1.0
    %v1065 = vmul.f32 %v1062, %v923
    %1067 = vrot.lane.b32.xlu0 %v1064, 64
    %v1068 = vpop.permute.xlu0 %1067
    %v1070 = vmul.f32 %v1062, %v1068
    %1072 = vrot.lane.b32.xlu0 %v1070, 32
    %v1073 = vpop.permute.xlu0 %1072
    %v1075 = vadd.f32 %v1065, %v1073
    %v1076 = vtanh.pop %v1075
    %1078 = vrot.lane.b32.xlu0 %v1076, 64
    %v1079 = vpop.permute.xlu0 %1078
    %v1081 = vmul.f32 %v1062, %v1079
    %1083 = vrot.lane.b32.xlu0 %v1081, 32
    %v1084 = vpop.permute.xlu0 %1083
    %v1085 = vsel %vm376, %v1084, 0
    %1087 = vmatpush.msra.mxu0 0.0
    %1088 = vmatpush.msra.mxu0 0.0
    %1089 = vmatpush.msra.mxu0 0.0
    %1090 = vmatpush.msra.mxu0 0.0
    %1091 = vmatpush.msra.mxu0 0.0
    %1092 = vmatpush.msra.mxu0 0.0
    %1093 = vmatpush.msra.mxu0 0.0
    %1094 = vmatpush.msra.mxu0 0.0
    %1095 = vmatpush.msra.mxu0 0.0
    %1096 = vmatpush.msra.mxu0 0.0
    %1097 = vmatpush.msra.mxu0 0.0
    %1098 = vmatpush.msra.mxu0 0.0
    %1099 = vmatpush.msra.mxu0 %v333
    %1100 = vmatpush.msra.mxu0 %v332
    %1101 = vmatpush.msra.mxu0 %v331
    %1102 = vmatpush.msra.mxu0 %v330
    %1103 = vmatmul.f32.gmra.mxu0 %v1085
    %v1104 = vpop.f32.mrf.mxu0
    %v1105 = vadd.f32 0.0, %v1104
    %1106 = vdwg.mxu0
    %v1108 = vrot.slane %v1020, 6
    %v1110 = vadd.f32 %v319, %v1108
    %v1111 = vxor.u32 %v1110, 2147483648
    %v1112 = vmul.f32 %v1111, 1.442695
    %v1113 = vpow.pop %v1112
    %v1114 = vadd.f32 %v1113, 1.0
    %v1115 = vrcp.pop %v1114
    %v1116 = vmul.f32 %v1114, %v1115
    %v1117 = vsub.f32 1.0, %v1116
    %v1118 = vmul.f32 %v1115, %v1117
    %v1119 = vadd.f32 %v1115, %v1118
    %vm1120 = vweird.f32 %v1114
    %vm1121 = vweird.f32 %v1115
    %vm1122 = vmor %vm1120, %vm1121
    %v1123 = vsel %vm1122, %v1115, %v1119
    %v1124 = vand.u32 2147483647, %v1114
    %vm1125 = vcmp.eq.f32.partialorder %v1124, 8.507059e+37
    %v1126 = vand.u32 %v1114, 2147483648
    %v1127 = vor.u32 1.1754944e-38, %v1126
    %v1128 = vsel %vm1125, %v1127, %v1123
    %v1129 = vmul.f32 1.0, %v1128
    %v1130 = vmul.f32 %v1129, 2.0
    %v1131 = vsub.f32 %v1130, 1.0
    %v1133 = vrot.slane %v990, 6
    %v1135 = vmul.f32 %v1129, %v1133
    %1137 = vrot.lane.b32.xlu0 %v1131, 64
    %v1138 = vpop.permute.xlu0 %1137
    %v1140 = vmul.f32 %v1129, %v1138
    %1142 = vrot.lane.b32.xlu0 %v1140, 32
    %v1143 = vpop.permute.xlu0 %1142
    %v1145 = vadd.f32 %v1135, %v1143
    %v1146 = vtanh.pop %v1145
    %1148 = vrot.lane.b32.xlu0 %v1146, 64
    %v1149 = vpop.permute.xlu0 %1148
    %v1151 = vmul.f32 %v1129, %v1149
    %v1153 = vrot.slane %v1151, 2
    %1154 = vrot.lane.b32.xlu0 %v1153, 32
    %v1155 = vpop.permute.xlu0 %1154
    %v1156 = vsel %vm376, %v1155, 0
    %1158 = vmatpush.msra.mxu0 0.0
    %1159 = vmatpush.msra.mxu0 0.0
    %1160 = vmatpush.msra.mxu0 0.0
    %1161 = vmatpush.msra.mxu0 0.0
    %1162 = vmatpush.msra.mxu0 0.0
    %1163 = vmatpush.msra.mxu0 0.0
    %1164 = vmatpush.msra.mxu0 0.0
    %1165 = vmatpush.msra.mxu0 0.0
    %1166 = vmatpush.msra.mxu0 0.0
    %1167 = vmatpush.msra.mxu0 0.0
    %1168 = vmatpush.msra.mxu0 0.0
    %1169 = vmatpush.msra.mxu0 0.0
    %1170 = vmatpush.msra.mxu0 %v327
    %1171 = vmatpush.msra.mxu0 %v325
    %1172 = vmatpush.msra.mxu0 %v323
    %1173 = vmatpush.msra.mxu0 %v321
    %1174 = vmatmul.f32.gmra.mxu0 %v1156
    %v1175 = vpop.f32.mrf.mxu0
    %v1176 = vadd.f32 0.0, %v1175
    %1177 = vdwg.mxu0
    %1178 = vmatpush.msra.mxu0 0.0
    %1179 = vmatpush.msra.mxu0 0.0
    %1180 = vmatpush.msra.mxu0 0.0
    %1181 = vmatpush.msra.mxu0 0.0
    %1182 = vmatpush.msra.mxu0 0.0
    %1183 = vmatpush.msra.mxu0 0.0
    %1184 = vmatpush.msra.mxu0 0.0
    %1185 = vmatpush.msra.mxu0 0.0
    %1186 = vmatpush.msra.mxu0 0.0
    %1187 = vmatpush.msra.mxu0 0.0
    %1188 = vmatpush.msra.mxu0 0.0
    %1189 = vmatpush.msra.mxu0 0.0
    %1190 = vmatpush.msra.mxu0 %v328
    %1191 = vmatpush.msra.mxu0 %v326
    %1192 = vmatpush.msra.mxu0 %v324
    %1193 = vmatpush.msra.mxu0 %v322
    %1194 = vmatmul.f32.gmra.mxu0 %v1156
    %v1195 = vpop.f32.mrf.mxu0
    %v1196 = vadd.f32 0.0, %v1195
    %1197 = vdwg.mxu0
    %v1198 = vadd.f32 %v1196, %v1105
    %v1199 = vadd.f32 %v1198, %v421
    %v1200 = vxor.u32 %v1199, 2147483648
    %v1201 = vmul.f32 %v1200, 1.442695
    %v1202 = vpow.pop %v1201
    %v1203 = vadd.f32 %v1202, 1.0
    %v1204 = vrcp.pop %v1203
    %v1205 = vmul.f32 %v1203, %v1204
    %v1206 = vsub.f32 1.0, %v1205
    %v1207 = vmul.f32 %v1204, %v1206
    %v1208 = vadd.f32 %v1204, %v1207
    %vm1209 = vweird.f32 %v1203
    %vm1210 = vweird.f32 %v1204
    %vm1211 = vmor %vm1209, %vm1210
    %v1212 = vsel %vm1211, %v1204, %v1208
    %v1213 = vand.u32 2147483647, %v1203
    %vm1214 = vcmp.eq.f32.partialorder %v1213, 8.507059e+37
    %v1215 = vand.u32 %v1203, 2147483648
    %v1216 = vor.u32 1.1754944e-38, %v1215
    %v1217 = vsel %vm1214, %v1216, %v1212
    %v1218 = vmul.f32 1.0, %v1217
    %v1219 = vmul.f32 %v1218, 2.0
    %v1220 = vsub.f32 %v1219, 1.0
    %v1221 = vmul.f32 %v1218, %v1075
    %1223 = vrot.lane.b32.xlu0 %v1220, 64
    %v1224 = vpop.permute.xlu0 %1223
    %v1226 = vmul.f32 %v1218, %v1224
    %1228 = vrot.lane.b32.xlu0 %v1226, 32
    %v1229 = vpop.permute.xlu0 %1228
    %v1231 = vadd.f32 %v1221, %v1229
    %v1232 = vtanh.pop %v1231
    %1234 = vrot.lane.b32.xlu0 %v1232, 64
    %v1235 = vpop.permute.xlu0 %1234
    %v1237 = vmul.f32 %v1218, %v1235
    %1239 = vrot.lane.b32.xlu0 %v1237, 32
    %v1240 = vpop.permute.xlu0 %1239
    %v1241 = vsel %vm376, %v1240, 0
    %1243 = vmatpush.msra.mxu0 0.0
    %1244 = vmatpush.msra.mxu0 0.0
    %1245 = vmatpush.msra.mxu0 0.0
    %1246 = vmatpush.msra.mxu0 0.0
    %1247 = vmatpush.msra.mxu0 0.0
    %1248 = vmatpush.msra.mxu0 0.0
    %1249 = vmatpush.msra.mxu0 0.0
    %1250 = vmatpush.msra.mxu0 0.0
    %1251 = vmatpush.msra.mxu0 0.0
    %1252 = vmatpush.msra.mxu0 0.0
    %1253 = vmatpush.msra.mxu0 0.0
    %1254 = vmatpush.msra.mxu0 0.0
    %1255 = vmatpush.msra.mxu0 %v333
    %1256 = vmatpush.msra.mxu0 %v332
    %1257 = vmatpush.msra.mxu0 %v331
    %1258 = vmatpush.msra.mxu0 %v330
    %1259 = vmatmul.f32.gmra.mxu0 %v1241
    %v1260 = vpop.f32.mrf.mxu0
    %v1261 = vadd.f32 0.0, %v1260
    %1262 = vdwg.mxu0
    %v1264 = vrot.slane %v1176, 4
    %v1266 = vadd.f32 %v319, %v1264
    %v1267 = vxor.u32 %v1266, 2147483648
    %v1268 = vmul.f32 %v1267, 1.442695
    %v1269 = vpow.pop %v1268
    %v1270 = vadd.f32 %v1269, 1.0
    %v1271 = vrcp.pop %v1270
    %v1272 = vmul.f32 %v1270, %v1271
    %v1273 = vsub.f32 1.0, %v1272
    %v1274 = vmul.f32 %v1271, %v1273
    %v1275 = vadd.f32 %v1271, %v1274
    %vm1276 = vweird.f32 %v1270
    %vm1277 = vweird.f32 %v1271
    %vm1278 = vmor %vm1276, %vm1277
    %v1279 = vsel %vm1278, %v1271, %v1275
    %v1280 = vand.u32 2147483647, %v1270
    %vm1281 = vcmp.eq.f32.partialorder %v1280, 8.507059e+37
    %v1282 = vand.u32 %v1270, 2147483648
    %v1283 = vor.u32 1.1754944e-38, %v1282
    %v1284 = vsel %vm1281, %v1283, %v1279
    %v1285 = vmul.f32 1.0, %v1284
    %v1286 = vmul.f32 %v1285, 2.0
    %v1287 = vsub.f32 %v1286, 1.0
    %v1289 = vrot.slane %v1145, 6
    %v1291 = vmul.f32 %v1285, %v1289
    %1293 = vrot.lane.b32.xlu0 %v1287, 64
    %v1294 = vpop.permute.xlu0 %1293
    %v1296 = vmul.f32 %v1285, %v1294
    %1298 = vrot.lane.b32.xlu0 %v1296, 32
    %v1299 = vpop.permute.xlu0 %1298
    %v1301 = vadd.f32 %v1291, %v1299
    %v1302 = vtanh.pop %v1301
    %1304 = vrot.lane.b32.xlu0 %v1302, 64
    %v1305 = vpop.permute.xlu0 %1304
    %v1307 = vmul.f32 %v1285, %v1305
    %v1309 = vrot.slane %v1307, 4
    %1310 = vrot.lane.b32.xlu0 %v1309, 32
    %v1311 = vpop.permute.xlu0 %1310
    %v1312 = vsel %vm376, %v1311, 0
    %1314 = vmatpush.msra.mxu0 0.0
    %1315 = vmatpush.msra.mxu0 0.0
    %1316 = vmatpush.msra.mxu0 0.0
    %1317 = vmatpush.msra.mxu0 0.0
    %1318 = vmatpush.msra.mxu0 0.0
    %1319 = vmatpush.msra.mxu0 0.0
    %1320 = vmatpush.msra.mxu0 0.0
    %1321 = vmatpush.msra.mxu0 0.0
    %1322 = vmatpush.msra.mxu0 0.0
    %1323 = vmatpush.msra.mxu0 0.0
    %1324 = vmatpush.msra.mxu0 0.0
    %1325 = vmatpush.msra.mxu0 0.0
    %1326 = vmatpush.msra.mxu0 %v327
    %1327 = vmatpush.msra.mxu0 %v325
    %1328 = vmatpush.msra.mxu0 %v323
    %1329 = vmatpush.msra.mxu0 %v321
    %1330 = vmatmul.f32.gmra.mxu0 %v1312
    %v1331 = vpop.f32.mrf.mxu0
    %v1332 = vadd.f32 0.0, %v1331
    %1333 = vdwg.mxu0
    %1334 = vmatpush.msra.mxu0 0.0
    %1335 = vmatpush.msra.mxu0 0.0
    %1336 = vmatpush.msra.mxu0 0.0
    %1337 = vmatpush.msra.mxu0 0.0
    %1338 = vmatpush.msra.mxu0 0.0
    %1339 = vmatpush.msra.mxu0 0.0
    %1340 = vmatpush.msra.mxu0 0.0
    %1341 = vmatpush.msra.mxu0 0.0
    %1342 = vmatpush.msra.mxu0 0.0
    %1343 = vmatpush.msra.mxu0 0.0
    %1344 = vmatpush.msra.mxu0 0.0
    %1345 = vmatpush.msra.mxu0 0.0
    %1346 = vmatpush.msra.mxu0 %v328
    %1347 = vmatpush.msra.mxu0 %v326
    %1348 = vmatpush.msra.mxu0 %v324
    %1349 = vmatpush.msra.mxu0 %v322
    %1350 = vmatmul.f32.gmra.mxu0 %v1312
    %v1351 = vpop.f32.mrf.mxu0
    %v1352 = vadd.f32 0.0, %v1351
    %1353 = vdwg.mxu0
    %v1354 = vadd.f32 %v1352, %v1261
    %v1355 = vadd.f32 %v1354, %v421
    %v1356 = vxor.u32 %v1355, 2147483648
    %v1357 = vmul.f32 %v1356, 1.442695
    %v1358 = vpow.pop %v1357
    %v1359 = vadd.f32 %v1358, 1.0
    %v1360 = vrcp.pop %v1359
    %v1361 = vmul.f32 %v1359, %v1360
    %v1362 = vsub.f32 1.0, %v1361
    %v1363 = vmul.f32 %v1360, %v1362
    %v1364 = vadd.f32 %v1360, %v1363
    %vm1365 = vweird.f32 %v1359
    %vm1366 = vweird.f32 %v1360
    %vm1367 = vmor %vm1365, %vm1366
    %v1368 = vsel %vm1367, %v1360, %v1364
    %v1369 = vand.u32 2147483647, %v1359
    %vm1370 = vcmp.eq.f32.partialorder %v1369, 8.507059e+37
    %v1371 = vand.u32 %v1359, 2147483648
    %v1372 = vor.u32 1.1754944e-38, %v1371
    %v1373 = vsel %vm1370, %v1372, %v1368
    %v1374 = vmul.f32 1.0, %v1373
    %v1375 = vmul.f32 %v1374, 2.0
    %v1376 = vsub.f32 %v1375, 1.0
    %v1377 = vmul.f32 %v1374, %v1231
    %1379 = vrot.lane.b32.xlu0 %v1376, 64
    %v1380 = vpop.permute.xlu0 %1379
    %v1382 = vmul.f32 %v1374, %v1380
    %1384 = vrot.lane.b32.xlu0 %v1382, 32
    %v1385 = vpop.permute.xlu0 %1384
    %v1387 = vadd.f32 %v1377, %v1385
    %v1388 = vtanh.pop %v1387
    %1390 = vrot.lane.b32.xlu0 %v1388, 64
    %v1391 = vpop.permute.xlu0 %1390
    %v1393 = vmul.f32 %v1374, %v1391
    %1395 = vrot.lane.b32.xlu0 %v1393, 32
    %v1396 = vpop.permute.xlu0 %1395
    %v1397 = vsel %vm376, %v1396, 0
    %1399 = vmatpush.msra.mxu0 0.0
    %1400 = vmatpush.msra.mxu0 0.0
    %1401 = vmatpush.msra.mxu0 0.0
    %1402 = vmatpush.msra.mxu0 0.0
    %1403 = vmatpush.msra.mxu0 0.0
    %1404 = vmatpush.msra.mxu0 0.0
    %1405 = vmatpush.msra.mxu0 0.0
    %1406 = vmatpush.msra.mxu0 0.0
    %1407 = vmatpush.msra.mxu0 0.0
    %1408 = vmatpush.msra.mxu0 0.0
    %1409 = vmatpush.msra.mxu0 0.0
    %1410 = vmatpush.msra.mxu0 0.0
    %1411 = vmatpush.msra.mxu0 %v333
    %1412 = vmatpush.msra.mxu0 %v332
    %1413 = vmatpush.msra.mxu0 %v331
    %1414 = vmatpush.msra.mxu0 %v330
    %1415 = vmatmul.f32.gmra.mxu0 %v1397
    %v1416 = vpop.f32.mrf.mxu0
    %v1417 = vadd.f32 0.0, %v1416
    %1418 = vdwg.mxu0
    %v1420 = vrot.slane %v1332, 2
    %v1422 = vadd.f32 %v319, %v1420
    %v1423 = vxor.u32 %v1422, 2147483648
    %v1424 = vmul.f32 %v1423, 1.442695
    %v1425 = vpow.pop %v1424
    %v1426 = vadd.f32 %v1425, 1.0
    %v1427 = vrcp.pop %v1426
    %v1428 = vmul.f32 %v1426, %v1427
    %v1429 = vsub.f32 1.0, %v1428
    %v1430 = vmul.f32 %v1427, %v1429
    %v1431 = vadd.f32 %v1427, %v1430
    %vm1432 = vweird.f32 %v1426
    %vm1433 = vweird.f32 %v1427
    %vm1434 = vmor %vm1432, %vm1433
    %v1435 = vsel %vm1434, %v1427, %v1431
    %v1436 = vand.u32 2147483647, %v1426
    %vm1437 = vcmp.eq.f32.partialorder %v1436, 8.507059e+37
    %v1438 = vand.u32 %v1426, 2147483648
    %v1439 = vor.u32 1.1754944e-38, %v1438
    %v1440 = vsel %vm1437, %v1439, %v1435
    %v1441 = vmul.f32 1.0, %v1440
    %v1442 = vmul.f32 %v1441, 2.0
    %v1443 = vsub.f32 %v1442, 1.0
    %v1445 = vrot.slane %v1301, 6
    %v1447 = vmul.f32 %v1441, %v1445
    %1449 = vrot.lane.b32.xlu0 %v1443, 64
    %v1450 = vpop.permute.xlu0 %1449
    %v1452 = vmul.f32 %v1441, %v1450
    %1454 = vrot.lane.b32.xlu0 %v1452, 32
    %v1455 = vpop.permute.xlu0 %1454
    %v1457 = vadd.f32 %v1447, %v1455
    %v1458 = vtanh.pop %v1457
    %1460 = vrot.lane.b32.xlu0 %v1458, 64
    %v1461 = vpop.permute.xlu0 %1460
    %v1463 = vmul.f32 %v1441, %v1461
    %v1465 = vrot.slane %v1463, 6
    %1466 = vrot.lane.b32.xlu0 %v1465, 32
    %v1467 = vpop.permute.xlu0 %1466
    %v1468 = vsel %vm376, %v1467, 0
    %1470 = vmatpush.msra.mxu0 0.0
    %1471 = vmatpush.msra.mxu0 0.0
    %1472 = vmatpush.msra.mxu0 0.0
    %1473 = vmatpush.msra.mxu0 0.0
    %1474 = vmatpush.msra.mxu0 0.0
    %1475 = vmatpush.msra.mxu0 0.0
    %1476 = vmatpush.msra.mxu0 0.0
    %1477 = vmatpush.msra.mxu0 0.0
    %1478 = vmatpush.msra.mxu0 0.0
    %1479 = vmatpush.msra.mxu0 0.0
    %1480 = vmatpush.msra.mxu0 0.0
    %1481 = vmatpush.msra.mxu0 0.0
    %1482 = vmatpush.msra.mxu0 %v328
    %1483 = vmatpush.msra.mxu0 %v326
    %1484 = vmatpush.msra.mxu0 %v324
    %1485 = vmatpush.msra.mxu0 %v322
    %1486 = vmatmul.f32.gmra.mxu0 %v1468
    %v1487 = vpop.f32.mrf.mxu0
    %v1488 = vadd.f32 0.0, %v1487
    %1489 = vdwg.mxu0
    %v1490 = vadd.f32 %v1488, %v1417
    %v1491 = vadd.f32 %v1490, %v421
    %v1492 = vxor.u32 %v1491, 2147483648
    %v1493 = vmul.f32 %v1492, 1.442695
    %v1494 = vpow.pop %v1493
    %v1495 = vadd.f32 %v1494, 1.0
    %v1496 = vrcp.pop %v1495
    %v1497 = vmul.f32 %v1495, %v1496
    %v1498 = vsub.f32 1.0, %v1497
    %v1499 = vmul.f32 %v1496, %v1498
    %v1500 = vadd.f32 %v1496, %v1499
    %vm1501 = vweird.f32 %v1495
    %vm1502 = vweird.f32 %v1496
    %vm1503 = vmor %vm1501, %vm1502
    %v1504 = vsel %vm1503, %v1496, %v1500
    %v1505 = vand.u32 2147483647, %v1495
    %vm1506 = vcmp.eq.f32.partialorder %v1505, 8.507059e+37
    %v1507 = vand.u32 %v1495, 2147483648
    %v1508 = vor.u32 1.1754944e-38, %v1507
    %v1509 = vsel %vm1506, %v1508, %v1504
    %v1510 = vmul.f32 1.0, %v1509
    %v1511 = vmul.f32 %v1510, 2.0
    %v1512 = vsub.f32 %v1511, 1.0
    %v1513 = vmul.f32 %v1510, %v1387
    %1515 = vrot.lane.b32.xlu0 %v1512, 64
    %v1516 = vpop.permute.xlu0 %1515
    %v1518 = vmul.f32 %v1510, %v1516
    %1520 = vrot.lane.b32.xlu0 %v1518, 32
    %v1521 = vpop.permute.xlu0 %1520
    %v1523 = vadd.f32 %v1513, %v1521
    %v1524 = vtanh.pop %v1523
    %1526 = vrot.lane.b32.xlu0 %v1524, 64
    %v1527 = vpop.permute.xlu0 %1526
    %v1529 = vmul.f32 %v1510, %v1527
    %v1530 = vld [vmem:[%s9] sm:$0xff]
    %v1531 = vld [vmem:[%s9 + $0x8] sm:$0xff]
    %v1532 = vld [vmem:[%s9 + $0x10] sm:$0xff]
    %v1533 = vld [vmem:[%s9 + $0x18] sm:$0xff]
    %v1534 = vld [vmem:[%s10] sm:$0x1]
    %v1536 = vperm.slane %v1534, 0
    %1539 = vrot.lane.b32.xlu0 %v1529, 32
    %v1540 = vpop.permute.xlu0 %1539
    %v1541 = vsel %vm376, %v1540, 0
    %1543 = vmatpush.msra.mxu0 0.0
    %1544 = vmatpush.msra.mxu0 0.0
    %1545 = vmatpush.msra.mxu0 0.0
    %1546 = vmatpush.msra.mxu0 0.0
    %1547 = vmatpush.msra.mxu0 0.0
    %1548 = vmatpush.msra.mxu0 0.0
    %1549 = vmatpush.msra.mxu0 0.0
    %1550 = vmatpush.msra.mxu0 0.0
    %1551 = vmatpush.msra.mxu0 0.0
    %1552 = vmatpush.msra.mxu0 0.0
    %1553 = vmatpush.msra.mxu0 0.0
    %1554 = vmatpush.msra.mxu0 0.0
    %1555 = vmatpush.msra.mxu0 %v1533
    %1556 = vmatpush.msra.mxu0 %v1532
    %1557 = vmatpush.msra.mxu0 %v1531
    %1558 = vmatpush.msra.mxu0 %v1530
    %1559 = vmatmul.f32.gmra.mxu0 %v1541
    %v1560 = vpop.f32.mrf.mxu0
    %v1561 = vadd.f32 %v1536, %v1560
    %1562 = vdwg.mxu0
    %1563 = vst.msk [vmem:[#allocation4] sm:$0x3] %vm281, %v1561
    // Predicated region
    $region46: #{tpu_custom_call.1} parent=1 // pred_check
      _
    $region47: #{tpu_custom_call.1} parent=1 // pred_check_branch
      %1565 = sbr.rel (0) target = $region49
    $region48: #{tpu_custom_call.1} parent=1 // pred_region
      %1567 = vsyncadd [#allocation3], 0
      %s1569 = sshll.u32 [#allocation2], 4
      %s1570 = int_to_ptr.vmem [resolvable:$true] %s1569
      %s1571 = sshll.u32 %s11, 4
      %s1572 = int_to_ptr.hbm [resolvable:$true] %s1571
      %1574 = dma.vmem_to_hbm [thread:$0]  %s1570, 32, %s1572, [#allocation3]
    $region49: #{tpu_custom_call.1} parent=1 // pred_fallthru
      _
    // Predicated region
    $region50: #{tpu_custom_call.1} parent=1 // pred_check
      _
    $region51: #{tpu_custom_call.1} parent=1 // pred_check_branch
      %1576 = sbr.rel (0) target = $region53
    $region52: #{tpu_custom_call.1} parent=1 // pred_region
      %1578 = vsyncadd [#allocation5], 0
      %s1580 = sshll.u32 [#allocation4], 4
      %s1581 = int_to_ptr.vmem [resolvable:$true] %s1580
      %s1582 = sshll.u32 %s12, 4
      %s1583 = int_to_ptr.hbm [resolvable:$true] %s1582
      %1585 = dma.vmem_to_hbm [thread:$0]  %s1581, 32, %s1583, [#allocation5]
    $region53: #{tpu_custom_call.1} parent=1 // pred_fallthru
      _
    // Predicated region
    $region54: #{tpu_custom_call.1} parent=1 // pred_check
      _
    $region55: #{tpu_custom_call.1} parent=1 // pred_check_branch
      %1587 = sbr.rel (0) target = $region57
    $region56: #{tpu_custom_call.1} parent=1 // pred_region
      %1589 = dma.done [#allocation3], 32
    $region57: #{tpu_custom_call.1} parent=1 // pred_fallthru
      _
    // Predicated region
    $region58: #{tpu_custom_call.1} parent=1 // pred_check
      _
    $region59: #{tpu_custom_call.1} parent=1 // pred_check_branch
      %1591 = sbr.rel (0) target = $region61
    $region60: #{tpu_custom_call.1} parent=1 // pred_region
      %1593 = dma.done [#allocation5], 32
    $region61: #{tpu_custom_call.1} parent=1 // pred_fallthru
      _
    %1594 = vsyncpa [#allocation3], 1
    %1595 = vsyncpa [#allocation5], 1

</llo_original>
